<compile_context>
chip_gen: v6e
topology: v6e:2x2x1
jax: 0.10.0
libtpu: 0.0.40
codegen_flags: <defaults>
</compile_context>

<pallas_src>
import functools

import jax
import jax.numpy as jnp
from jax.experimental import pallas as pl
from jax.experimental.pallas import tpu as pltpu


def _fused_kernel(x_ref, w1_ref, w2_ref, p_ref, o_ref, *, c1, c2, inv_m):
    # x_ref: (C0, M)   w1_ref: (C1, C0)   w2_ref: (C2, C1)
    # p_ref: (C1 + 2*C2, 1) packed [g1; g2; b2]   o_ref: (C2, M)
    eps = 1e-5

    x = x_ref[...]
    w1 = w1_ref[...]
    w2 = w2_ref[...]
    g1 = p_ref[0:c1, :]                      # (C1, 1)  static, sublane-aligned slices
    g2 = p_ref[c1:c1 + c2, :]                # (C2, 1)
    b2 = p_ref[c1 + c2:c1 + 2 * c2, :]       # (C2, 1)

    # conv2d23 (1x1, no bias) == channel matmul.
    y = jnp.dot(w1, x, preferred_element_type=jnp.float32)          # (C1, M)

    # batchnorm2d23: training-mode batch stats (biased variance), one pass.
    s1 = jnp.sum(y, axis=-1, keepdims=True)                          # (C1, 1)
    q1 = jnp.sum(y * y, axis=-1, keepdims=True)
    mu1 = s1 * inv_m
    var1 = q1 * inv_m - mu1 * mu1
    a1 = g1 * jax.lax.rsqrt(var1 + eps)                              # (C1, 1)
    # BN1's shift (b1 - mu1*a1) is constant over M -> removed exactly by BN2's
    # batch-mean subtraction, so only the per-channel scale is applied here.
    y_s = y * a1

    # conv2d24 (1x1, no bias).
    z = jnp.dot(w2, y_s, preferred_element_type=jnp.float32)         # (C2, M)

    # batchnorm2d24.  sum_M(z) == W2 @ (a1 * sum_M(y)) -> tiny MXU matvec
    # instead of a full cross-lane reduction over the largest tensor.
    s2 = jnp.dot(w2, a1 * s1, preferred_element_type=jnp.float32)    # (C2, 1)
    q2 = jnp.sum(z * z, axis=-1, keepdims=True)
    mu2 = s2 * inv_m
    var2 = q2 * inv_m - mu2 * mu2
    a2 = g2 * jax.lax.rsqrt(var2 + eps)                              # (C2, 1)
    o_ref[...] = z * a2 + (b2 - mu2 * a2)


@jax.jit
def fused_conv_bn_conv_bn(x_nchw, w1, g1, b1, w2, g2, b2):
    """x_nchw: (N, 144, H, W) f32
       w1: (40, 144)  PyTorch conv weight (out, in), 1x1 kernel squeezed
       g1/b1: (40,)   w2: (240, 40)   g2/b2: (240,)
       returns (N, 240, H, W) f32  (training-mode BN forward)
    """
    del b1  # BN1's bias cancels exactly through BN2's batch-mean subtraction.
    N, C0, H, W = x_nchw.shape
    C1 = w1.shape[0]
    C2 = w2.shape[0]
    M = N * H * W

    # NCHW -> (C0, M); free reshape for the module's N == 1 case.
    if N == 1:
        x2d = x_nchw.reshape(C0, M)
    else:
        # TODO(synk): for N>1 prefer gridding over N instead of these transposes.
        x2d = jnp.transpose(x_nchw.reshape(N, C0, H * W), (1, 0, 2)).reshape(C0, M)

    # Pack the three tiny per-channel BN params into a single VMEM input.
    params = jnp.concatenate([g1, g2, b2]).reshape(C1 + 2 * C2, 1)

    flops = 2 * C1 * C0 * M + 2 * C2 * C1 * M + 8 * C2 * M          # ~6.8e6
    bytes_accessed = 4 * (C0 * M + C2 * M + C1 * C0 + C2 * C1 + C1 + 2 * C2)

    out2d = pl.pallas_call(
        functools.partial(_fused_kernel, c1=C1, c2=C2, inv_m=1.0 / M),
        out_shape=jax.ShapeDtypeStruct((C2, M), jnp.float32),
        in_specs=[pl.BlockSpec(memory_space=pltpu.MemorySpace.VMEM)] * 4,
        out_specs=pl.BlockSpec(memory_space=pltpu.MemorySpace.VMEM),
        cost_estimate=pl.CostEstimate(
            flops=flops, transcendentals=C1 + C2, bytes_accessed=bytes_accessed),
    )(x2d, w1, w2, params)

    if N == 1:
        return out2d.reshape(1, C2, H, W)
    return jnp.transpose(out2d.reshape(C2, N, H * W), (1, 0, 2)).reshape(N, C2, H, W)


def _reference(x_nchw, w1, g1, b1, w2, g2, b2):
    # Faithful PyTorch training-mode forward (batch stats, biased variance).
    eps = 1e-5
    N, C0, H, W = x_nchw.shape
    x2d = jnp.transpose(x_nchw, (0, 2, 3, 1)).reshape(-1, C0)  # (M, C0)
    y = x2d @ w1.T
    mu = y.mean(0, keepdims=True)
    var = ((y - mu) ** 2).mean(0, keepdims=True)
    y = (y - mu) / jnp.sqrt(var + eps) * g1 + b1
    z = y @ w2.T
    mu2 = z.mean(0, keepdims=True)
    var2 = ((z - mu2) ** 2).mean(0, keepdims=True)
    z = (z - mu2) / jnp.sqrt(var2 + eps) * g2 + b2
    return jnp.transpose(z.reshape(N, H, W, -1), (0, 3, 1, 2))


if __name__ == "__main__":
    key = jax.random.PRNGKey(0)
    k_x, k_w1, k_w2, k_g1, k_b1, k_g2, k_b2 = jax.random.split(key, 7)

    N, C0, H, W = 1, 144, 14, 14
    C1, C2 = 40, 240

    x = jax.random.normal(k_x, (N, C0, H, W), dtype=jnp.float32)

    # Conv weights in PyTorch (out, in) form (1x1 kernel squeezed).
    w1 = jax.random.normal(k_w1, (C1, C0), dtype=jnp.float32) * (1.0 / jnp.sqrt(C0))
    w2 = jax.random.normal(k_w2, (C2, C1), dtype=jnp.float32) * (1.0 / jnp.sqrt(C1))

    # BatchNorm affine params.
    g1 = 1.0 + 0.1 * jax.random.normal(k_g1, (C1,), dtype=jnp.float32)
    b1 = 0.1 * jax.random.normal(k_b1, (C1,), dtype=jnp.float32)
    g2 = 1.0 + 0.1 * jax.random.normal(k_g2, (C2,), dtype=jnp.float32)
    b2 = 0.1 * jax.random.normal(k_b2, (C2,), dtype=jnp.float32)

    out = fused_conv_bn_conv_bn(x, w1, g1, b1, w2, g2, b2)
    out = jax.block_until_ready(out)

    ref = _reference(x, w1, g1, b1, w2, g2, b2)
    assert out.shape == (N, C2, H, W), out.shape
    assert jnp.allclose(out, ref, atol=1e-4, rtol=1e-4), float(
        jnp.max(jnp.abs(out - ref))
    )

    print("KERNEL_OK")
</pallas_src>

<mosaic_0001>
module attributes {stable_mosaic.version = 11 : i64} {
  func.func @_fused_kernel(%arg0: memref<144x196xf32, #tpu.memory_space<vmem>>, %arg1: memref<40x144xf32, #tpu.memory_space<vmem>>, %arg2: memref<240x40xf32, #tpu.memory_space<vmem>>, %arg3: memref<520x1xf32, #tpu.memory_space<vmem>>, %arg4: memref<240x196xf32, #tpu.memory_space<vmem>>) attributes {dimension_semantics = [], scalar_prefetch = 0 : i64, scratch_operands = 0 : i64, tpu.core_type = #tpu.core_type<tc>} {
    %c0 = arith.constant 0 : index
    %c0_0 = arith.constant 0 : index
    %0 = vector.load %arg0[%c0, %c0_0] : memref<144x196xf32, #tpu.memory_space<vmem>>, vector<144x196xf32>
    %c0_1 = arith.constant 0 : index
    %c0_2 = arith.constant 0 : index
    %1 = vector.load %arg1[%c0_1, %c0_2] : memref<40x144xf32, #tpu.memory_space<vmem>>, vector<40x144xf32>
    %c0_3 = arith.constant 0 : index
    %c0_4 = arith.constant 0 : index
    %2 = vector.load %arg2[%c0_3, %c0_4] : memref<240x40xf32, #tpu.memory_space<vmem>>, vector<240x40xf32>
    %c0_5 = arith.constant 0 : index
    %c0_6 = arith.constant 0 : index
    %3 = vector.load %arg3[%c0_5, %c0_6] : memref<520x1xf32, #tpu.memory_space<vmem>>, vector<40x1xf32>
    %c40 = arith.constant 40 : index
    %c0_7 = arith.constant 0 : index
    %4 = vector.load %arg3[%c40, %c0_7] : memref<520x1xf32, #tpu.memory_space<vmem>>, vector<240x1xf32>
    %c280 = arith.constant 280 : index
    %c0_8 = arith.constant 0 : index
    %5 = vector.load %arg3[%c280, %c0_8] : memref<520x1xf32, #tpu.memory_space<vmem>>, vector<240x1xf32>
    %cst = arith.constant dense<0.000000e+00> : vector<40x196xf32>
    %6 = tpu.matmul %1, %0, %cst {dimension_numbers = #tpu.dot_dimension_numbers<[1], [0], [0], [1], [0, 0, 1, 1], [], []>} : vector<40x144xf32>, vector<144x196xf32>, vector<40x196xf32> -> vector<40x196xf32>
    %cst_9 = arith.constant dense<0.000000e+00> : vector<40xf32>
    %7 = vector.multi_reduction <add>, %6, %cst_9 [1] : vector<40x196xf32> to vector<40xf32>
    %8 = vector.shape_cast %7 : vector<40xf32> to vector<40x1xf32>
    %9 = arith.mulf %6, %6 : vector<40x196xf32>
    %cst_10 = arith.constant dense<0.000000e+00> : vector<40xf32>
    %10 = vector.multi_reduction <add>, %9, %cst_10 [1] : vector<40x196xf32> to vector<40xf32>
    %11 = vector.shape_cast %10 : vector<40xf32> to vector<40x1xf32>
    %cst_11 = arith.constant 0.00510204071 : f32
    %12 = vector.broadcast %cst_11 : f32 to vector<40x1xf32>
    %13 = arith.mulf %8, %12 : vector<40x1xf32>
    %cst_12 = arith.constant 0.00510204071 : f32
    %14 = vector.broadcast %cst_12 : f32 to vector<40x1xf32>
    %15 = arith.mulf %11, %14 : vector<40x1xf32>
    %16 = arith.mulf %13, %13 : vector<40x1xf32>
    %17 = arith.subf %15, %16 : vector<40x1xf32>
    %cst_13 = arith.constant 9.99999974E-6 : f32
    %18 = vector.broadcast %cst_13 : f32 to vector<40x1xf32>
    %19 = arith.addf %17, %18 : vector<40x1xf32>
    %20 = math.rsqrt %19 : vector<40x1xf32>
    %21 = arith.mulf %3, %20 : vector<40x1xf32>
    %22 = vector.broadcast %21 : vector<40x1xf32> to vector<40x196xf32>
    %23 = arith.mulf %6, %22 : vector<40x196xf32>
    %cst_14 = arith.constant dense<0.000000e+00> : vector<240x196xf32>
    %24 = tpu.matmul %2, %23, %cst_14 {dimension_numbers = #tpu.dot_dimension_numbers<[1], [0], [0], [1], [0, 0, 1, 1], [], []>} : vector<240x40xf32>, vector<40x196xf32>, vector<240x196xf32> -> vector<240x196xf32>
    %25 = arith.mulf %21, %8 : vector<40x1xf32>
    %cst_15 = arith.constant dense<0.000000e+00> : vector<240x1xf32>
    %26 = tpu.matmul %2, %25, %cst_15 {dimension_numbers = #tpu.dot_dimension_numbers<[1], [0], [0], [1], [0, 0, 1, 1], [], []>} : vector<240x40xf32>, vector<40x1xf32>, vector<240x1xf32> -> vector<240x1xf32>
    %27 = arith.mulf %24, %24 : vector<240x196xf32>
    %cst_16 = arith.constant dense<0.000000e+00> : vector<240xf32>
    %28 = vector.multi_reduction <add>, %27, %cst_16 [1] : vector<240x196xf32> to vector<240xf32>
    %29 = vector.shape_cast %28 : vector<240xf32> to vector<240x1xf32>
    %cst_17 = arith.constant 0.00510204071 : f32
    %30 = vector.broadcast %cst_17 : f32 to vector<240x1xf32>
    %31 = arith.mulf %26, %30 : vector<240x1xf32>
    %cst_18 = arith.constant 0.00510204071 : f32
    %32 = vector.broadcast %cst_18 : f32 to vector<240x1xf32>
    %33 = arith.mulf %29, %32 : vector<240x1xf32>
    %34 = arith.mulf %31, %31 : vector<240x1xf32>
    %35 = arith.subf %33, %34 : vector<240x1xf32>
    %cst_19 = arith.constant 9.99999974E-6 : f32
    %36 = vector.broadcast %cst_19 : f32 to vector<240x1xf32>
    %37 = arith.addf %35, %36 : vector<240x1xf32>
    %38 = math.rsqrt %37 : vector<240x1xf32>
    %39 = arith.mulf %4, %38 : vector<240x1xf32>
    %40 = vector.broadcast %39 : vector<240x1xf32> to vector<240x196xf32>
    %41 = arith.mulf %24, %40 : vector<240x196xf32>
    %42 = arith.mulf %31, %39 : vector<240x1xf32>
    %43 = arith.subf %5, %42 : vector<240x1xf32>
    %44 = vector.broadcast %43 : vector<240x1xf32> to vector<240x196xf32>
    %45 = arith.addf %41, %44 : vector<240x196xf32>
    %c0_20 = arith.constant 0 : index
    %c0_21 = arith.constant 0 : index
    %46 = vector.load %arg4[%c0_20, %c0_21] : memref<240x196xf32, #tpu.memory_space<vmem>>, vector<240x196xf32>
    tpu.vector_store %arg4[%c0_20, %c0_21], %45 {strides = array<i32>} : memref<240x196xf32, #tpu.memory_space<vmem>>, vector<240x196xf32>,
    return
  }
}

</mosaic_0001>

<llo_original>
// kernel: fused_conv_bn_conv_bn.1
$region0: #{fused_conv_bn_conv_bn.1}
  #allocation0 [shape = 'u32[]', space=smem, size = 0x4, offset = 0x4, fixed_abs, tag = 'smem constant byte address 0x4 - core index']
  #allocation1 [shape = 'u32[144,128]{1,0:T(1,128)}', space=vmem, size = 0x12000, scoped, tag = 'internal scratch']
  %s0 = inlined_call_operand.vmem [shape: f32[144,196], index: 0, kind: input, shape index: {}]
  %s1 = inlined_call_operand.vmem [shape: f32[40,144], index: 1, kind: input, shape index: {}]
  %s2 = inlined_call_operand.vmem [shape: f32[240,40], index: 2, kind: input, shape index: {}]
  %s3 = inlined_call_operand.vmem [shape: f32[520,1], index: 3, kind: input, shape index: {}]
  %s4 = inlined_call_operand.vmem [shape: f32[240,196], index: 4, kind: output, shape index: {}]
  %s5 = sld [smem:[#allocation0]]
  $region26: #{fused_conv_bn_conv_bn.1} parent=0
    _
  %s7 = ssub.s32 1, %s5
  %s8 = scalar_select 0, %s7, %s5
  // Predicated region
  $region2: #{fused_conv_bn_conv_bn.1} parent=0 // pred_check
    _
  $region3: #{fused_conv_bn_conv_bn.1} parent=0 // pred_check_branch
    %10 = sbr.rel (0) target = $region5
  $region4: #{fused_conv_bn_conv_bn.1} parent=0 // pred_region
    _
  $region5: #{fused_conv_bn_conv_bn.1} parent=0 // pred_fallthru
    _
  // Predicated region
  $region6: #{fused_conv_bn_conv_bn.1} parent=0 // pred_check
    _
  $region7: #{fused_conv_bn_conv_bn.1} parent=0 // pred_check_branch
    %12 = sbr.rel (0) target = $region9
  $region8: #{fused_conv_bn_conv_bn.1} parent=0 // pred_region
    _
  $region9: #{fused_conv_bn_conv_bn.1} parent=0 // pred_fallthru
    _
  // Predicated region
  $region10: #{fused_conv_bn_conv_bn.1} parent=0 // pred_check
    _
  $region11: #{fused_conv_bn_conv_bn.1} parent=0 // pred_check_branch
    %14 = sbr.rel (0) target = $region13
  $region12: #{fused_conv_bn_conv_bn.1} parent=0 // pred_region
    _
  $region13: #{fused_conv_bn_conv_bn.1} parent=0 // pred_fallthru
    _
  // Predicated region
  $region14: #{fused_conv_bn_conv_bn.1} parent=0 // pred_check
    _
  $region15: #{fused_conv_bn_conv_bn.1} parent=0 // pred_check_branch
    %16 = sbr.rel (0) target = $region17
  $region16: #{fused_conv_bn_conv_bn.1} parent=0 // pred_region
    _
  $region17: #{fused_conv_bn_conv_bn.1} parent=0 // pred_fallthru
    _
  %v17 = vld [vmem:[%s0] sm:$0xff]
  %v18 = vld [vmem:[%s0 + $0x8] sm:$0xff]
  %v19 = vld [vmem:[%s0 + $0x10] sm:$0xff]
  %v20 = vld [vmem:[%s0 + $0x18] sm:$0xff]
  %v21 = vld [vmem:[%s0 + $0x20] sm:$0xff]
  %v22 = vld [vmem:[%s0 + $0x28] sm:$0xff]
  %v23 = vld [vmem:[%s0 + $0x30] sm:$0xff]
  %v24 = vld [vmem:[%s0 + $0x38] sm:$0xff]
  %v25 = vld [vmem:[%s0 + $0x40] sm:$0xff]
  %v26 = vld [vmem:[%s0 + $0x48] sm:$0xff]
  %v27 = vld [vmem:[%s0 + $0x50] sm:$0xff]
  %v28 = vld [vmem:[%s0 + $0x58] sm:$0xff]
  %v29 = vld [vmem:[%s0 + $0x60] sm:$0xff]
  %v30 = vld [vmem:[%s0 + $0x68] sm:$0xff]
  %v31 = vld [vmem:[%s0 + $0x70] sm:$0xff]
  %v32 = vld [vmem:[%s0 + $0x78] sm:$0xff]
  %v33 = vld [vmem:[%s0 + $0x80] sm:$0xff]
  %v34 = vld [vmem:[%s0 + $0x88] sm:$0xff]
  %v35 = vld [vmem:[%s0 + $0x90] sm:$0xff]
  %v36 = vld [vmem:[%s0 + $0x98] sm:$0xff]
  %v37 = vld [vmem:[%s0 + $0xa0] sm:$0xff]
  %v38 = vld [vmem:[%s0 + $0xa8] sm:$0xff]
  %v39 = vld [vmem:[%s0 + $0xb0] sm:$0xff]
  %v40 = vld [vmem:[%s0 + $0xb8] sm:$0xff]
  %v41 = vld [vmem:[%s0 + $0xc0] sm:$0xff]
  %v42 = vld [vmem:[%s0 + $0xc8] sm:$0xff]
  %v43 = vld [vmem:[%s0 + $0xd0] sm:$0xff]
  %v44 = vld [vmem:[%s0 + $0xd8] sm:$0xff]
  %v45 = vld [vmem:[%s0 + $0xe0] sm:$0xff]
  %v46 = vld [vmem:[%s0 + $0xe8] sm:$0xff]
  %v47 = vld [vmem:[%s0 + $0xf0] sm:$0xff]
  %v48 = vld [vmem:[%s0 + $0xf8] sm:$0xff]
  %v49 = vld [vmem:[%s0 + $0x100] sm:$0xff]
  %v50 = vld [vmem:[%s0 + $0x108] sm:$0xff]
  %v51 = vld [vmem:[%s0 + $0x110] sm:$0xff]
  %v52 = vld [vmem:[%s0 + $0x118] sm:$0xff]
  %v53 = vld [vmem:[%s1] sm:$0xff]
  %v54 = vld [vmem:[%s1 + $0x8] sm:$0xff]
  %v55 = vld [vmem:[%s1 + $0x10] sm:$0xff]
  %v56 = vld [vmem:[%s1 + $0x18] sm:$0xff]
  %v57 = vld [vmem:[%s1 + $0x20] sm:$0xff]
  %v58 = vld [vmem:[%s1 + $0x28] sm:$0xff]
  %v59 = vld [vmem:[%s1 + $0x30] sm:$0xff]
  %v60 = vld [vmem:[%s1 + $0x38] sm:$0xff]
  %v61 = vld [vmem:[%s1 + $0x40] sm:$0xff]
  %v62 = vld [vmem:[%s1 + $0x48] sm:$0xff]
  %v63 = vld [vmem:[%s2] sm:$0xff]
  %v64 = vld [vmem:[%s2 + $0x8] sm:$0xff]
  %v65 = vld [vmem:[%s2 + $0x10] sm:$0xff]
  %v66 = vld [vmem:[%s2 + $0x18] sm:$0xff]
  %v67 = vld [vmem:[%s2 + $0x20] sm:$0xff]
  %v68 = vld [vmem:[%s2 + $0x28] sm:$0xff]
  %v69 = vld [vmem:[%s2 + $0x30] sm:$0xff]
  %v70 = vld [vmem:[%s2 + $0x38] sm:$0xff]
  %v71 = vld [vmem:[%s2 + $0x40] sm:$0xff]
  %v72 = vld [vmem:[%s2 + $0x48] sm:$0xff]
  %v73 = vld [vmem:[%s2 + $0x50] sm:$0xff]
  %v74 = vld [vmem:[%s2 + $0x58] sm:$0xff]
  %v75 = vld [vmem:[%s2 + $0x60] sm:$0xff]
  %v76 = vld [vmem:[%s2 + $0x68] sm:$0xff]
  %v77 = vld [vmem:[%s2 + $0x70] sm:$0xff]
  %v78 = vld [vmem:[%s2 + $0x78] sm:$0xff]
  %v79 = vld [vmem:[%s2 + $0x80] sm:$0xff]
  %v80 = vld [vmem:[%s2 + $0x88] sm:$0xff]
  %v81 = vld [vmem:[%s2 + $0x90] sm:$0xff]
  %v82 = vld [vmem:[%s2 + $0x98] sm:$0xff]
  %v83 = vld [vmem:[%s2 + $0xa0] sm:$0xff]
  %v84 = vld [vmem:[%s2 + $0xa8] sm:$0xff]
  %v85 = vld [vmem:[%s2 + $0xb0] sm:$0xff]
  %v86 = vld [vmem:[%s2 + $0xb8] sm:$0xff]
  %v87 = vld [vmem:[%s2 + $0xc0] sm:$0xff]
  %v88 = vld [vmem:[%s2 + $0xc8] sm:$0xff]
  %v89 = vld [vmem:[%s2 + $0xd0] sm:$0xff]
  %v90 = vld [vmem:[%s2 + $0xd8] sm:$0xff]
  %v91 = vld [vmem:[%s2 + $0xe0] sm:$0xff]
  %v92 = vld [vmem:[%s2 + $0xe8] sm:$0xff]
  %v93 = vld [vmem:[%s3] sm:$0xff]
  %v94 = vld [vmem:[%s3 + $0x8] sm:$0xff]
  %v95 = vld [vmem:[%s3 + $0x10] sm:$0xff]
  %v96 = vld [vmem:[%s3 + $0x18] sm:$0xff]
  %v97 = vld [vmem:[%s3 + $0x20] sm:$0xff]
  %v98 = vld [vmem:[%s3 + $0x28] sm:$0xff]
  %v99 = vld [vmem:[%s3 + $0x30] sm:$0xff]
  %v100 = vld [vmem:[%s3 + $0x38] sm:$0xff]
  %v101 = vld [vmem:[%s3 + $0x40] sm:$0xff]
  %v102 = vld [vmem:[%s3 + $0x48] sm:$0xff]
  %v103 = vld [vmem:[%s3 + $0x50] sm:$0xff]
  %v104 = vld [vmem:[%s3 + $0x58] sm:$0xff]
  %v105 = vld [vmem:[%s3 + $0x60] sm:$0xff]
  %v106 = vld [vmem:[%s3 + $0x68] sm:$0xff]
  %v107 = vld [vmem:[%s3 + $0x70] sm:$0xff]
  %v108 = vld [vmem:[%s3 + $0x78] sm:$0xff]
  %v109 = vld [vmem:[%s3 + $0x80] sm:$0xff]
  %v110 = vld [vmem:[%s3 + $0x88] sm:$0xff]
  %v111 = vld [vmem:[%s3 + $0x90] sm:$0xff]
  %v112 = vld [vmem:[%s3 + $0x98] sm:$0xff]
  %v113 = vld [vmem:[%s3 + $0xa0] sm:$0xff]
  %v114 = vld [vmem:[%s3 + $0xa8] sm:$0xff]
  %v115 = vld [vmem:[%s3 + $0xb0] sm:$0xff]
  %v116 = vld [vmem:[%s3 + $0xb8] sm:$0xff]
  %v117 = vld [vmem:[%s3 + $0xc0] sm:$0xff]
  %v118 = vld [vmem:[%s3 + $0xc8] sm:$0xff]
  %v119 = vld [vmem:[%s3 + $0xd0] sm:$0xff]
  %v120 = vld [vmem:[%s3 + $0xd8] sm:$0xff]
  %v121 = vld [vmem:[%s3 + $0xe0] sm:$0xff]
  %v122 = vld [vmem:[%s3 + $0xe8] sm:$0xff]
  %v123 = vld [vmem:[%s3 + $0xf0] sm:$0xff]
  %v124 = vld [vmem:[%s3 + $0xf8] sm:$0xff]
  %v125 = vld [vmem:[%s3 + $0x100] sm:$0xff]
  %v126 = vld [vmem:[%s3 + $0x108] sm:$0xff]
  %v127 = vld [vmem:[%s3 + $0x110] sm:$0xff]
  %v128 = vld [vmem:[%s3 + $0x118] sm:$0xff]
  %v129 = vld [vmem:[%s3 + $0x120] sm:$0xff]
  %v130 = vld [vmem:[%s3 + $0x128] sm:$0xff]
  %v131 = vld [vmem:[%s3 + $0x130] sm:$0xff]
  %v132 = vld [vmem:[%s3 + $0x138] sm:$0xff]
  %v133 = vld [vmem:[%s3 + $0x140] sm:$0xff]
  %v134 = vld [vmem:[%s3 + $0x148] sm:$0xff]
  %v135 = vld [vmem:[%s3 + $0x150] sm:$0xff]
  %v136 = vld [vmem:[%s3 + $0x158] sm:$0xff]
  %v137 = vld [vmem:[%s3 + $0x160] sm:$0xff]
  %v138 = vld [vmem:[%s3 + $0x168] sm:$0xff]
  %v139 = vld [vmem:[%s3 + $0x170] sm:$0xff]
  %v140 = vld [vmem:[%s3 + $0x178] sm:$0xff]
  %v141 = vld [vmem:[%s3 + $0x180] sm:$0xff]
  %v142 = vld [vmem:[%s3 + $0x188] sm:$0xff]
  %v143 = vld [vmem:[%s3 + $0x190] sm:$0xff]
  %v144 = vld [vmem:[%s3 + $0x198] sm:$0xff]
  %v145 = vld [vmem:[%s3 + $0x1a0] sm:$0xff]
  %v146 = vld [vmem:[%s3 + $0x1a8] sm:$0xff]
  %v147 = vld [vmem:[%s3 + $0x1b0] sm:$0xff]
  %v148 = vld [vmem:[%s3 + $0x1b8] sm:$0xff]
  %v149 = vld [vmem:[%s3 + $0x1c0] sm:$0xff]
  %v150 = vld [vmem:[%s3 + $0x1c8] sm:$0xff]
  %v151 = vld [vmem:[%s3 + $0x1d0] sm:$0xff]
  %v152 = vld [vmem:[%s3 + $0x1d8] sm:$0xff]
  %v153 = vld [vmem:[%s3 + $0x1e0] sm:$0xff]
  %v154 = vld [vmem:[%s3 + $0x1e8] sm:$0xff]
  %v155 = vld [vmem:[%s3 + $0x1f0] sm:$0xff]
  %v156 = vld [vmem:[%s3 + $0x1f8] sm:$0xff]
  %v157 = vld [vmem:[%s3 + $0x200] sm:$0xff]
  %vm158 = vcmask 130048
  %v160 = vsel %vm158, %v54, 0
  %v163 = vsel %vm158, %v56, 0
  %v166 = vsel %vm158, %v58, 0
  %v169 = vsel %vm158, %v60, 0
  %v172 = vsel %vm158, %v62, 0
  %174 = vmatprep.subr.mxu0 %v48
  %175 = vmatpush1.msra.mxu0 %v47
  %176 = vmatprep.subr.mxu0 %v46
  %177 = vmatpush1.msra.mxu0 %v45
  %178 = vmatprep.subr.mxu0 %v44
  %179 = vmatpush1.msra.mxu0 %v43
  %180 = vmatprep.subr.mxu0 %v42
  %181 = vmatpush1.msra.mxu0 %v41
  %182 = vmatprep.subr.mxu0 %v40
  %183 = vmatpush1.msra.mxu0 %v39
  %184 = vmatprep.subr.mxu0 %v38
  %185 = vmatpush1.msra.mxu0 %v37
  %186 = vmatprep.subr.mxu0 %v36
  %187 = vmatpush1.msra.mxu0 %v35
  %188 = vmatprep.subr.mxu0 %v34
  %189 = vmatpush1.msra.mxu0 %v33
  %190 = vmatprep.subr.mxu0 %v32
  %191 = vmatpush1.msra.mxu0 %v31
  %192 = vmatprep.subr.mxu0 %v30
  %193 = vmatpush1.msra.mxu0 %v29
  %194 = vmatprep.subr.mxu0 %v28
  %195 = vmatpush1.msra.mxu0 %v27
  %196 = vmatprep.subr.mxu0 %v26
  %197 = vmatpush1.msra.mxu0 %v25
  %198 = vmatprep.subr.mxu0 %v24
  %199 = vmatpush1.msra.mxu0 %v23
  %200 = vmatprep.subr.mxu0 %v22
  %201 = vmatpush1.msra.mxu0 %v21
  %202 = vmatprep.subr.mxu0 %v20
  %203 = vmatpush1.msra.mxu0 %v19
  %204 = vmatprep.subr.mxu0 %v18
  %205 = vmatpush1.msra.mxu0 %v17
  %206 = vmatprep.subr.mxu0 0.0
  %207 = vmatpush2.msra.mxu0 0.0
  %208 = vmatprep.subr.mxu0 0.0
  %209 = vmatpush2.msra.mxu0 0.0
  %210 = vmatprep.subr.mxu0 0.0
  %211 = vmatpush2.msra.mxu0 0.0
  %212 = vmatprep.subr.mxu0 0.0
  %213 = vmatpush2.msra.mxu0 0.0
  %214 = vmatprep.subr.mxu0 0.0
  %215 = vmatpush2.msra.mxu0 0.0
  %216 = vmatprep.subr.mxu0 0.0
  %217 = vmatpush2.msra.mxu0 0.0
  %218 = vmatprep.subr.mxu0 0.0
  %219 = vmatpush2.msra.mxu0 0.0
  %220 = vmatprep.subr.mxu0 0.0
  %221 = vmatpush2.msra.mxu0 0.0
  %222 = vmatprep.subr.mxu0 0.0
  %223 = vmatpush2.msra.mxu0 0.0
  %224 = vmatprep.subr.mxu0 0.0
  %225 = vmatpush2.msra.mxu0 0.0
  %226 = vmatprep.subr.mxu0 0.0
  %227 = vmatpush2.msra.mxu0 0.0
  %228 = vmatprep.subr.mxu0 0.0
  %229 = vmatpush2.msra.mxu0 0.0
  %230 = vmatprep.subr.mxu0 0.0
  %231 = vmatpush2.msra.mxu0 0.0
  %232 = vmatprep.subr.mxu0 0.0
  %233 = vmatpush2.msra.mxu0 0.0
  %234 = vmatprep.subr.mxu0 %v52
  %235 = vmatpush2.msra.mxu0 %v51
  %236 = vmatprep.subr.mxu0 %v50
  %237 = vmatpush2.msra.mxu0 %v49
  %238 = vmatprep.mubr.f32.mxu0 %v160
  %239 = vmatmul.mubr.f32.gmra.mxu0 %v53
  %v240 = vpop.f32.mrf.mxu0
  %v241 = vadd.f32 0.0, %v240
  %v242 = vpop.f32.mrf.mxu0
  %v243 = vadd.f32 0.0, %v242
  %244 = vmatprep.mubr.f32.mxu0 %v163
  %245 = vmatmul.mubr.f32.gmra.mxu0 %v55
  %v246 = vpop.f32.mrf.mxu0
  %v247 = vadd.f32 0.0, %v246
  %v248 = vpop.f32.mrf.mxu0
  %v249 = vadd.f32 0.0, %v248
  %250 = vmatprep.mubr.f32.mxu0 %v166
  %251 = vmatmul.mubr.f32.gmra.mxu0 %v57
  %v252 = vpop.f32.mrf.mxu0
  %v253 = vadd.f32 0.0, %v252
  %v254 = vpop.f32.mrf.mxu0
  %v255 = vadd.f32 0.0, %v254
  %256 = vmatprep.mubr.f32.mxu0 %v169
  %257 = vmatmul.mubr.f32.gmra.mxu0 %v59
  %v258 = vpop.f32.mrf.mxu0
  %v259 = vadd.f32 0.0, %v258
  %v260 = vpop.f32.mrf.mxu0
  %v261 = vadd.f32 0.0, %v260
  %262 = vmatprep.mubr.f32.mxu0 %v172
  %263 = vmatmul.mubr.f32.gmra.mxu0 %v61
  %v264 = vpop.f32.mrf.mxu0
  %v265 = vadd.f32 0.0, %v264
  %v266 = vpop.f32.mrf.mxu0
  %v267 = vadd.f32 0.0, %v266
  %268 = vdwg.mxu0
  %vm269 = vcmask 556032
  %v270 = vsel %vm269, %v243, 0.0
  %v271 = vadd.f32 %v241, %v270
  %272 = vadd.xlane.f32.xlu0 %v271
  %v273 = vpop.xlane.xlu0 %272
  %v274 = vsel %vm269, %v249, 0.0
  %v275 = vadd.f32 %v247, %v274
  %276 = vadd.xlane.f32.xlu0 %v275
  %v277 = vpop.xlane.xlu0 %276
  %v278 = vsel %vm269, %v255, 0.0
  %v279 = vadd.f32 %v253, %v278
  %280 = vadd.xlane.f32.xlu0 %v279
  %v281 = vpop.xlane.xlu0 %280
  %v282 = vsel %vm269, %v261, 0.0
  %v283 = vadd.f32 %v259, %v282
  %284 = vadd.xlane.f32.xlu0 %v283
  %v285 = vpop.xlane.xlu0 %284
  %v286 = vsel %vm269, %v267, 0.0
  %v287 = vadd.f32 %v265, %v286
  %288 = vadd.xlane.f32.xlu0 %v287
  %v289 = vpop.xlane.xlu0 %288
  %v290 = vmul.f32 %v241, %v241
  %v291 = vmul.f32 %v243, %v243
  %v292 = vmul.f32 %v247, %v247
  %v293 = vmul.f32 %v249, %v249
  %v294 = vmul.f32 %v253, %v253
  %v295 = vmul.f32 %v255, %v255
  %v296 = vmul.f32 %v259, %v259
  %v297 = vmul.f32 %v261, %v261
  %v298 = vmul.f32 %v265, %v265
  %v299 = vmul.f32 %v267, %v267
  %v300 = vsel %vm269, %v291, 0.0
  %v301 = vadd.f32 %v290, %v300
  %302 = vadd.xlane.f32.xlu0 %v301
  %v303 = vpop.xlane.xlu0 %302
  %v304 = vsel %vm269, %v293, 0.0
  %v305 = vadd.f32 %v292, %v304
  %306 = vadd.xlane.f32.xlu0 %v305
  %v307 = vpop.xlane.xlu0 %306
  %v308 = vsel %vm269, %v295, 0.0
  %v309 = vadd.f32 %v294, %v308
  %310 = vadd.xlane.f32.xlu0 %v309
  %v311 = vpop.xlane.xlu0 %310
  %v312 = vsel %vm269, %v297, 0.0
  %v313 = vadd.f32 %v296, %v312
  %314 = vadd.xlane.f32.xlu0 %v313
  %v315 = vpop.xlane.xlu0 %314
  %v316 = vsel %vm269, %v299, 0.0
  %v317 = vadd.f32 %v298, %v316
  %318 = vadd.xlane.f32.xlu0 %v317
  %v319 = vpop.xlane.xlu0 %318
  %v320 = vmul.f32 %v273, 0.0051020407
  %v321 = vmul.f32 %v277, 0.0051020407
  %v322 = vmul.f32 %v281, 0.0051020407
  %v323 = vmul.f32 %v285, 0.0051020407
  %v324 = vmul.f32 %v289, 0.0051020407
  %v325 = vmul.f32 %v303, 0.0051020407
  %v326 = vmul.f32 %v307, 0.0051020407
  %v327 = vmul.f32 %v311, 0.0051020407
  %v328 = vmul.f32 %v315, 0.0051020407
  %v329 = vmul.f32 %v319, 0.0051020407
  %v330 = vmul.f32 %v320, %v320
  %v331 = vmul.f32 %v321, %v321
  %v332 = vmul.f32 %v322, %v322
  %v333 = vmul.f32 %v323, %v323
  %v334 = vmul.f32 %v324, %v324
  %v335 = vsub.f32 %v325, %v330
  %v336 = vsub.f32 %v326, %v331
  %v337 = vsub.f32 %v327, %v332
  %v338 = vsub.f32 %v328, %v333
  %v339 = vsub.f32 %v329, %v334
  %v340 = vadd.f32 %v335, 1e-05
  %v341 = vadd.f32 %v336, 1e-05
  %v342 = vadd.f32 %v337, 1e-05
  %v343 = vadd.f32 %v338, 1e-05
  %v344 = vadd.f32 %v339, 1e-05
  %v345 = vrsqrt.pop %v340
  %v346 = vrsqrt.pop %v341
  %v347 = vrsqrt.pop %v342
  %v348 = vrsqrt.pop %v343
  %v349 = vrsqrt.pop %v344
  %v350 = vmul.f32 %v93, %v345
  %v351 = vmul.f32 %v94, %v346
  %v352 = vmul.f32 %v95, %v347
  %v353 = vmul.f32 %v96, %v348
  %v354 = vmul.f32 %v97, %v349
  %356 = vset.pattern.permute.xlu0 0
  %357 = vperm.xlu0 %356, %v350
  %v358 = vpop.permute.xlu0 %357
  %361 = vset.pattern.permute.xlu0 0
  %362 = vperm.xlu0 %361, %v351
  %v363 = vpop.permute.xlu0 %362
  %366 = vset.pattern.permute.xlu0 0
  %367 = vperm.xlu0 %366, %v352
  %v368 = vpop.permute.xlu0 %367
  %371 = vset.pattern.permute.xlu0 0
  %372 = vperm.xlu0 %371, %v353
  %v373 = vpop.permute.xlu0 %372
  %376 = vset.pattern.permute.xlu0 0
  %377 = vperm.xlu0 %376, %v354
  %v378 = vpop.permute.xlu0 %377
  %v380 = vmul.f32 %v241, %v358
  %v381 = vmul.f32 %v243, %v358
  %v382 = vmul.f32 %v247, %v363
  %v383 = vmul.f32 %v249, %v363
  %v384 = vmul.f32 %v253, %v368
  %v385 = vmul.f32 %v255, %v368
  %v386 = vmul.f32 %v259, %v373
  %v387 = vmul.f32 %v261, %v373
  %v388 = vmul.f32 %v265, %v378
  %v389 = vmul.f32 %v267, %v378
  %vm390 = vcmask 326656
  %v392 = vsel %vm390, %v63, 0
  %v395 = vsel %vm390, %v64, 0
  %v398 = vsel %vm390, %v65, 0
  %v401 = vsel %vm390, %v66, 0
  %v404 = vsel %vm390, %v67, 0
  %v407 = vsel %vm390, %v68, 0
  %v410 = vsel %vm390, %v69, 0
  %v413 = vsel %vm390, %v70, 0
  %v416 = vsel %vm390, %v71, 0
  %v419 = vsel %vm390, %v72, 0
  %v422 = vsel %vm390, %v73, 0
  %v425 = vsel %vm390, %v74, 0
  %v428 = vsel %vm390, %v75, 0
  %v431 = vsel %vm390, %v76, 0
  %v434 = vsel %vm390, %v77, 0
  %v437 = vsel %vm390, %v78, 0
  %v440 = vsel %vm390, %v79, 0
  %v443 = vsel %vm390, %v80, 0
  %v446 = vsel %vm390, %v81, 0
  %v449 = vsel %vm390, %v82, 0
  %v452 = vsel %vm390, %v83, 0
  %v455 = vsel %vm390, %v84, 0
  %v458 = vsel %vm390, %v85, 0
  %v461 = vsel %vm390, %v86, 0
  %v464 = vsel %vm390, %v87, 0
  %v467 = vsel %vm390, %v88, 0
  %v470 = vsel %vm390, %v89, 0
  %v473 = vsel %vm390, %v90, 0
  %v476 = vsel %vm390, %v91, 0
  %v479 = vsel %vm390, %v92, 0
  %481 = vmatprep.subr.mxu0 0.0
  %482 = vmatpush1.msra.mxu0 0.0
  %483 = vmatprep.subr.mxu0 0.0
  %484 = vmatpush1.msra.mxu0 0.0
  %485 = vmatprep.subr.mxu0 0.0
  %486 = vmatpush1.msra.mxu0 0.0
  %487 = vmatprep.subr.mxu0 0.0
  %488 = vmatpush1.msra.mxu0 0.0
  %489 = vmatprep.subr.mxu0 0.0
  %490 = vmatpush1.msra.mxu0 0.0
  %491 = vmatprep.subr.mxu0 0.0
  %492 = vmatpush1.msra.mxu0 0.0
  %493 = vmatprep.subr.mxu0 0.0
  %494 = vmatpush1.msra.mxu0 0.0
  %495 = vmatprep.subr.mxu0 0.0
  %496 = vmatpush1.msra.mxu0 0.0
  %497 = vmatprep.subr.mxu0 0.0
  %498 = vmatpush1.msra.mxu0 0.0
  %499 = vmatprep.subr.mxu0 0.0
  %500 = vmatpush1.msra.mxu0 0.0
  %501 = vmatprep.subr.mxu0 0.0
  %502 = vmatpush1.msra.mxu0 0.0
  %503 = vmatprep.subr.mxu0 %v389
  %504 = vmatpush1.msra.mxu0 %v388
  %505 = vmatprep.subr.mxu0 %v387
  %506 = vmatpush1.msra.mxu0 %v386
  %507 = vmatprep.subr.mxu0 %v385
  %508 = vmatpush1.msra.mxu0 %v384
  %509 = vmatprep.subr.mxu0 %v383
  %510 = vmatpush1.msra.mxu0 %v382
  %511 = vmatprep.subr.mxu0 %v381
  %512 = vmatpush1.msra.mxu0 %v380
  %513 = vmatprep.subr.mxu0 0.0
  %514 = vmatpush2.msra.mxu0 0.0
  %515 = vmatprep.subr.mxu0 0.0
  %516 = vmatpush2.msra.mxu0 0.0
  %517 = vmatprep.subr.mxu0 0.0
  %518 = vmatpush2.msra.mxu0 0.0
  %519 = vmatprep.subr.mxu0 0.0
  %520 = vmatpush2.msra.mxu0 0.0
  %521 = vmatprep.subr.mxu0 0.0
  %522 = vmatpush2.msra.mxu0 0.0
  %523 = vmatprep.subr.mxu0 0.0
  %524 = vmatpush2.msra.mxu0 0.0
  %525 = vmatprep.subr.mxu0 0.0
  %526 = vmatpush2.msra.mxu0 0.0
  %527 = vmatprep.subr.mxu0 0.0
  %528 = vmatpush2.msra.mxu0 0.0
  %529 = vmatprep.subr.mxu0 0.0
  %530 = vmatpush2.msra.mxu0 0.0
  %531 = vmatprep.subr.mxu0 0.0
  %532 = vmatpush2.msra.mxu0 0.0
  %533 = vmatprep.subr.mxu0 0.0
  %534 = vmatpush2.msra.mxu0 0.0
  %535 = vmatprep.subr.mxu0 0.0
  %536 = vmatpush2.msra.mxu0 0.0
  %537 = vmatprep.subr.mxu0 0.0
  %538 = vmatpush2.msra.mxu0 0.0
  %539 = vmatprep.subr.mxu0 0.0
  %540 = vmatpush2.msra.mxu0 0.0
  %541 = vmatprep.subr.mxu0 0.0
  %542 = vmatpush2.msra.mxu0 0.0
  %543 = vmatprep.subr.mxu0 0.0
  %544 = vmatpush2.msra.mxu0 0.0
  %545 = vmatprep.mubr.f32.mxu0 0.0
  %546 = vmatmul.mubr.f32.gmra.mxu0 %v392
  %v547 = vpop.f32.mrf.mxu0
  %v548 = vadd.f32 0.0, %v547
  %v549 = vpop.f32.mrf.mxu0
  %v550 = vadd.f32 0.0, %v549
  %551 = vmatprep.mubr.f32.mxu0 0.0
  %552 = vmatmul.mubr.f32.gmra.mxu0 %v395
  %v553 = vpop.f32.mrf.mxu0
  %v554 = vadd.f32 0.0, %v553
  %v555 = vpop.f32.mrf.mxu0
  %v556 = vadd.f32 0.0, %v555
  %557 = vmatprep.mubr.f32.mxu0 0.0
  %558 = vmatmul.mubr.f32.gmra.mxu0 %v398
  %v559 = vpop.f32.mrf.mxu0
  %v560 = vadd.f32 0.0, %v559
  %v561 = vpop.f32.mrf.mxu0
  %v562 = vadd.f32 0.0, %v561
  %563 = vmatprep.mubr.f32.mxu0 0.0
  %564 = vmatmul.mubr.f32.gmra.mxu0 %v401
  %v565 = vpop.f32.mrf.mxu0
  %v566 = vadd.f32 0.0, %v565
  %v567 = vpop.f32.mrf.mxu0
  %v568 = vadd.f32 0.0, %v567
  %569 = vmatprep.mubr.f32.mxu0 0.0
  %570 = vmatmul.mubr.f32.gmra.mxu0 %v404
  %v571 = vpop.f32.mrf.mxu0
  %v572 = vadd.f32 0.0, %v571
  %v573 = vpop.f32.mrf.mxu0
  %v574 = vadd.f32 0.0, %v573
  %575 = vmatprep.mubr.f32.mxu0 0.0
  %576 = vmatmul.mubr.f32.gmra.mxu0 %v407
  %v577 = vpop.f32.mrf.mxu0
  %v578 = vadd.f32 0.0, %v577
  %v579 = vpop.f32.mrf.mxu0
  %v580 = vadd.f32 0.0, %v579
  %581 = vmatprep.mubr.f32.mxu0 0.0
  %582 = vmatmul.mubr.f32.gmra.mxu0 %v410
  %v583 = vpop.f32.mrf.mxu0
  %v584 = vadd.f32 0.0, %v583
  %v585 = vpop.f32.mrf.mxu0
  %v586 = vadd.f32 0.0, %v585
  %587 = vmatprep.mubr.f32.mxu0 0.0
  %588 = vmatmul.mubr.f32.gmra.mxu0 %v413
  %v589 = vpop.f32.mrf.mxu0
  %v590 = vadd.f32 0.0, %v589
  %v591 = vpop.f32.mrf.mxu0
  %v592 = vadd.f32 0.0, %v591
  %593 = vmatprep.mubr.f32.mxu0 0.0
  %594 = vmatmul.mubr.f32.gmra.mxu0 %v416
  %v595 = vpop.f32.mrf.mxu0
  %v596 = vadd.f32 0.0, %v595
  %v597 = vpop.f32.mrf.mxu0
  %v598 = vadd.f32 0.0, %v597
  %599 = vmatprep.mubr.f32.mxu0 0.0
  %600 = vmatmul.mubr.f32.gmra.mxu0 %v419
  %v601 = vpop.f32.mrf.mxu0
  %v602 = vadd.f32 0.0, %v601
  %v603 = vpop.f32.mrf.mxu0
  %v604 = vadd.f32 0.0, %v603
  %605 = vmatprep.mubr.f32.mxu0 0.0
  %606 = vmatmul.mubr.f32.gmra.mxu0 %v422
  %v607 = vpop.f32.mrf.mxu0
  %v608 = vadd.f32 0.0, %v607
  %v609 = vpop.f32.mrf.mxu0
  %v610 = vadd.f32 0.0, %v609
  %611 = vmatprep.mubr.f32.mxu0 0.0
  %612 = vmatmul.mubr.f32.gmra.mxu0 %v425
  %v613 = vpop.f32.mrf.mxu0
  %v614 = vadd.f32 0.0, %v613
  %v615 = vpop.f32.mrf.mxu0
  %v616 = vadd.f32 0.0, %v615
  %617 = vmatprep.mubr.f32.mxu0 0.0
  %618 = vmatmul.mubr.f32.gmra.mxu0 %v428
  %v619 = vpop.f32.mrf.mxu0
  %v620 = vadd.f32 0.0, %v619
  %v621 = vpop.f32.mrf.mxu0
  %v622 = vadd.f32 0.0, %v621
  %623 = vmatprep.mubr.f32.mxu0 0.0
  %624 = vmatmul.mubr.f32.gmra.mxu0 %v431
  %v625 = vpop.f32.mrf.mxu0
  %v626 = vadd.f32 0.0, %v625
  %v627 = vpop.f32.mrf.mxu0
  %v628 = vadd.f32 0.0, %v627
  %629 = vmatprep.mubr.f32.mxu0 0.0
  %630 = vmatmul.mubr.f32.gmra.mxu0 %v434
  %v631 = vpop.f32.mrf.mxu0
  %v632 = vadd.f32 0.0, %v631
  %v633 = vpop.f32.mrf.mxu0
  %v634 = vadd.f32 0.0, %v633
  %635 = vmatprep.mubr.f32.mxu0 0.0
  %636 = vmatmul.mubr.f32.gmra.mxu0 %v437
  %v637 = vpop.f32.mrf.mxu0
  %v638 = vadd.f32 0.0, %v637
  %v639 = vpop.f32.mrf.mxu0
  %v640 = vadd.f32 0.0, %v639
  %641 = vmatprep.mubr.f32.mxu0 0.0
  %642 = vmatmul.mubr.f32.gmra.mxu0 %v440
  %v643 = vpop.f32.mrf.mxu0
  %v644 = vadd.f32 0.0, %v643
  %v645 = vpop.f32.mrf.mxu0
  %v646 = vadd.f32 0.0, %v645
  %647 = vmatprep.mubr.f32.mxu0 0.0
  %648 = vmatmul.mubr.f32.gmra.mxu0 %v443
  %v649 = vpop.f32.mrf.mxu0
  %v650 = vadd.f32 0.0, %v649
  %v651 = vpop.f32.mrf.mxu0
  %v652 = vadd.f32 0.0, %v651
  %653 = vmatprep.mubr.f32.mxu0 0.0
  %654 = vmatmul.mubr.f32.gmra.mxu0 %v446
  %v655 = vpop.f32.mrf.mxu0
  %v656 = vadd.f32 0.0, %v655
  %v657 = vpop.f32.mrf.mxu0
  %v658 = vadd.f32 0.0, %v657
  %659 = vmatprep.mubr.f32.mxu0 0.0
  %660 = vmatmul.mubr.f32.gmra.mxu0 %v449
  %v661 = vpop.f32.mrf.mxu0
  %v662 = vadd.f32 0.0, %v661
  %v663 = vpop.f32.mrf.mxu0
  %v664 = vadd.f32 0.0, %v663
  %665 = vmatprep.mubr.f32.mxu0 0.0
  %666 = vmatmul.mubr.f32.gmra.mxu0 %v452
  %v667 = vpop.f32.mrf.mxu0
  %v668 = vadd.f32 0.0, %v667
  %v669 = vpop.f32.mrf.mxu0
  %v670 = vadd.f32 0.0, %v669
  %671 = vmatprep.mubr.f32.mxu0 0.0
  %672 = vmatmul.mubr.f32.gmra.mxu0 %v455
  %v673 = vpop.f32.mrf.mxu0
  %v674 = vadd.f32 0.0, %v673
  %v675 = vpop.f32.mrf.mxu0
  %v676 = vadd.f32 0.0, %v675
  %677 = vmatprep.mubr.f32.mxu0 0.0
  %678 = vmatmul.mubr.f32.gmra.mxu0 %v458
  %v679 = vpop.f32.mrf.mxu0
  %v680 = vadd.f32 0.0, %v679
  %v681 = vpop.f32.mrf.mxu0
  %v682 = vadd.f32 0.0, %v681
  %683 = vmatprep.mubr.f32.mxu0 0.0
  %684 = vmatmul.mubr.f32.gmra.mxu0 %v461
  %v685 = vpop.f32.mrf.mxu0
  %v686 = vadd.f32 0.0, %v685
  %v687 = vpop.f32.mrf.mxu0
  %v688 = vadd.f32 0.0, %v687
  %689 = vmatprep.mubr.f32.mxu0 0.0
  %690 = vmatmul.mubr.f32.gmra.mxu0 %v464
  %v691 = vpop.f32.mrf.mxu0
  %v692 = vadd.f32 0.0, %v691
  %v693 = vpop.f32.mrf.mxu0
  %v694 = vadd.f32 0.0, %v693
  %695 = vmatprep.mubr.f32.mxu0 0.0
  %696 = vmatmul.mubr.f32.gmra.mxu0 %v467
  %v697 = vpop.f32.mrf.mxu0
  %v698 = vadd.f32 0.0, %v697
  %v699 = vpop.f32.mrf.mxu0
  %v700 = vadd.f32 0.0, %v699
  %701 = vmatprep.mubr.f32.mxu0 0.0
  %702 = vmatmul.mubr.f32.gmra.mxu0 %v470
  %v703 = vpop.f32.mrf.mxu0
  %v704 = vadd.f32 0.0, %v703
  %v705 = vpop.f32.mrf.mxu0
  %v706 = vadd.f32 0.0, %v705
  %707 = vmatprep.mubr.f32.mxu0 0.0
  %708 = vmatmul.mubr.f32.gmra.mxu0 %v473
  %v709 = vpop.f32.mrf.mxu0
  %v710 = vadd.f32 0.0, %v709
  %v711 = vpop.f32.mrf.mxu0
  %v712 = vadd.f32 0.0, %v711
  %713 = vmatprep.mubr.f32.mxu0 0.0
  %714 = vmatmul.mubr.f32.gmra.mxu0 %v476
  %v715 = vpop.f32.mrf.mxu0
  %v716 = vadd.f32 0.0, %v715
  %v717 = vpop.f32.mrf.mxu0
  %v718 = vadd.f32 0.0, %v717
  %719 = vmatprep.mubr.f32.mxu0 0.0
  %720 = vmatmul.mubr.f32.gmra.mxu0 %v479
  %v721 = vpop.f32.mrf.mxu0
  %v722 = vadd.f32 0.0, %v721
  %v723 = vpop.f32.mrf.mxu0
  %v724 = vadd.f32 0.0, %v723
  %725 = vdwg.mxu0
  %v726 = vmul.f32 %v350, %v273
  %v727 = vmul.f32 %v351, %v277
  %v728 = vmul.f32 %v352, %v281
  %v729 = vmul.f32 %v353, %v285
  %v730 = vmul.f32 %v354, %v289
  %731 = vmatprep.subr.mxu0 0.0
  %732 = vmatpush1.msra.mxu0 0.0
  %733 = vmatprep.subr.mxu0 0.0
  %734 = vmatpush1.msra.mxu0 0.0
  %735 = vmatprep.subr.mxu0 0.0
  %736 = vmatpush1.msra.mxu0 0.0
  %737 = vmatprep.subr.mxu0 0.0
  %738 = vmatpush1.msra.mxu0 0.0
  %739 = vmatprep.subr.mxu0 0.0
  %740 = vmatpush1.msra.mxu0 0.0
  %741 = vmatprep.subr.mxu0 0.0
  %742 = vmatpush1.msra.mxu0 0.0
  %743 = vmatprep.subr.mxu0 0.0
  %744 = vmatpush1.msra.mxu0 0.0
  %745 = vmatprep.subr.mxu0 0.0
  %746 = vmatpush1.msra.mxu0 0.0
  %747 = vmatprep.subr.mxu0 0.0
  %748 = vmatpush1.msra.mxu0 0.0
  %749 = vmatprep.subr.mxu0 0.0
  %750 = vmatpush1.msra.mxu0 0.0
  %751 = vmatprep.subr.mxu0 0.0
  %752 = vmatpush1.msra.mxu0 0.0
  %753 = vmatprep.subr.mxu0 0.0
  %754 = vmatpush1.msra.mxu0 %v730
  %755 = vmatprep.subr.mxu0 0.0
  %756 = vmatpush1.msra.mxu0 %v729
  %757 = vmatprep.subr.mxu0 0.0
  %758 = vmatpush1.msra.mxu0 %v728
  %759 = vmatprep.subr.mxu0 0.0
  %760 = vmatpush1.msra.mxu0 %v727
  %761 = vmatprep.subr.mxu0 0.0
  %762 = vmatpush1.msra.mxu0 %v726
  %763 = vmatprep.subr.mxu0 0.0
  %764 = vmatpush2.msra.mxu0 0.0
  %765 = vmatprep.subr.mxu0 0.0
  %766 = vmatpush2.msra.mxu0 0.0
  %767 = vmatprep.subr.mxu0 0.0
  %768 = vmatpush2.msra.mxu0 0.0
  %769 = vmatprep.subr.mxu0 0.0
  %770 = vmatpush2.msra.mxu0 0.0
  %771 = vmatprep.subr.mxu0 0.0
  %772 = vmatpush2.msra.mxu0 0.0
  %773 = vmatprep.subr.mxu0 0.0
  %774 = vmatpush2.msra.mxu0 0.0
  %775 = vmatprep.subr.mxu0 0.0
  %776 = vmatpush2.msra.mxu0 0.0
  %777 = vmatprep.subr.mxu0 0.0
  %778 = vmatpush2.msra.mxu0 0.0
  %779 = vmatprep.subr.mxu0 0.0
  %780 = vmatpush2.msra.mxu0 0.0
  %781 = vmatprep.subr.mxu0 0.0
  %782 = vmatpush2.msra.mxu0 0.0
  %783 = vmatprep.subr.mxu0 0.0
  %784 = vmatpush2.msra.mxu0 0.0
  %785 = vmatprep.subr.mxu0 0.0
  %786 = vmatpush2.msra.mxu0 0.0
  %787 = vmatprep.subr.mxu0 0.0
  %788 = vmatpush2.msra.mxu0 0.0
  %789 = vmatprep.subr.mxu0 0.0
  %790 = vmatpush2.msra.mxu0 0.0
  %791 = vmatprep.subr.mxu0 0.0
  %792 = vmatpush2.msra.mxu0 0.0
  %793 = vmatprep.subr.mxu0 0.0
  %794 = vmatpush2.msra.mxu0 0.0
  %795 = vmatprep.mubr.f32.mxu0 0.0
  %796 = vmatmul.mubr.f32.gmra.mxu0 %v392
  %v797 = vpop.f32.mrf.mxu0
  %v798 = vadd.f32 0.0, %v797
  %v799 = vpop.f32.mrf.mxu0
  %800 = vmatprep.mubr.f32.mxu0 0.0
  %801 = vmatmul.mubr.f32.gmra.mxu0 %v395
  %v802 = vpop.f32.mrf.mxu0
  %v803 = vadd.f32 0.0, %v802
  %v804 = vpop.f32.mrf.mxu0
  %805 = vmatprep.mubr.f32.mxu0 0.0
  %806 = vmatmul.mubr.f32.gmra.mxu0 %v398
  %v807 = vpop.f32.mrf.mxu0
  %v808 = vadd.f32 0.0, %v807
  %v809 = vpop.f32.mrf.mxu0
  %810 = vmatprep.mubr.f32.mxu0 0.0
  %811 = vmatmul.mubr.f32.gmra.mxu0 %v401
  %v812 = vpop.f32.mrf.mxu0
  %v813 = vadd.f32 0.0, %v812
  %v814 = vpop.f32.mrf.mxu0
  %815 = vmatprep.mubr.f32.mxu0 0.0
  %816 = vmatmul.mubr.f32.gmra.mxu0 %v404
  %v817 = vpop.f32.mrf.mxu0
  %v818 = vadd.f32 0.0, %v817
  %v819 = vpop.f32.mrf.mxu0
  %820 = vmatprep.mubr.f32.mxu0 0.0
  %821 = vmatmul.mubr.f32.gmra.mxu0 %v407
  %v822 = vpop.f32.mrf.mxu0
  %v823 = vadd.f32 0.0, %v822
  %v824 = vpop.f32.mrf.mxu0
  %825 = vmatprep.mubr.f32.mxu0 0.0
  %826 = vmatmul.mubr.f32.gmra.mxu0 %v410
  %v827 = vpop.f32.mrf.mxu0
  %v828 = vadd.f32 0.0, %v827
  %v829 = vpop.f32.mrf.mxu0
  %830 = vmatprep.mubr.f32.mxu0 0.0
  %831 = vmatmul.mubr.f32.gmra.mxu0 %v413
  %v832 = vpop.f32.mrf.mxu0
  %v833 = vadd.f32 0.0, %v832
  %v834 = vpop.f32.mrf.mxu0
  %835 = vmatprep.mubr.f32.mxu0 0.0
  %836 = vmatmul.mubr.f32.gmra.mxu0 %v416
  %v837 = vpop.f32.mrf.mxu0
  %v838 = vadd.f32 0.0, %v837
  %v839 = vpop.f32.mrf.mxu0
  %840 = vmatprep.mubr.f32.mxu0 0.0
  %841 = vmatmul.mubr.f32.gmra.mxu0 %v419
  %v842 = vpop.f32.mrf.mxu0
  %v843 = vadd.f32 0.0, %v842
  %v844 = vpop.f32.mrf.mxu0
  %845 = vmatprep.mubr.f32.mxu0 0.0
  %846 = vmatmul.mubr.f32.gmra.mxu0 %v422
  %v847 = vpop.f32.mrf.mxu0
  %v848 = vadd.f32 0.0, %v847
  %v849 = vpop.f32.mrf.mxu0
  %850 = vmatprep.mubr.f32.mxu0 0.0
  %851 = vmatmul.mubr.f32.gmra.mxu0 %v425
  %v852 = vpop.f32.mrf.mxu0
  %v853 = vadd.f32 0.0, %v852
  %v854 = vpop.f32.mrf.mxu0
  %855 = vmatprep.mubr.f32.mxu0 0.0
  %856 = vmatmul.mubr.f32.gmra.mxu0 %v428
  %v857 = vpop.f32.mrf.mxu0
  %v858 = vadd.f32 0.0, %v857
  %v859 = vpop.f32.mrf.mxu0
  %860 = vmatprep.mubr.f32.mxu0 0.0
  %861 = vmatmul.mubr.f32.gmra.mxu0 %v431
  %v862 = vpop.f32.mrf.mxu0
  %v863 = vadd.f32 0.0, %v862
  %v864 = vpop.f32.mrf.mxu0
  %865 = vmatprep.mubr.f32.mxu0 0.0
  %866 = vmatmul.mubr.f32.gmra.mxu0 %v434
  %v867 = vpop.f32.mrf.mxu0
  %v868 = vadd.f32 0.0, %v867
  %v869 = vpop.f32.mrf.mxu0
  %870 = vmatprep.mubr.f32.mxu0 0.0
  %871 = vmatmul.mubr.f32.gmra.mxu0 %v437
  %v872 = vpop.f32.mrf.mxu0
  %v873 = vadd.f32 0.0, %v872
  %v874 = vpop.f32.mrf.mxu0
  %875 = vmatprep.mubr.f32.mxu0 0.0
  %876 = vmatmul.mubr.f32.gmra.mxu0 %v440
  %v877 = vpop.f32.mrf.mxu0
  %v878 = vadd.f32 0.0, %v877
  %v879 = vpop.f32.mrf.mxu0
  %880 = vmatprep.mubr.f32.mxu0 0.0
  %881 = vmatmul.mubr.f32.gmra.mxu0 %v443
  %v882 = vpop.f32.mrf.mxu0
  %v883 = vadd.f32 0.0, %v882
  %v884 = vpop.f32.mrf.mxu0
  %885 = vmatprep.mubr.f32.mxu0 0.0
  %886 = vmatmul.mubr.f32.gmra.mxu0 %v446
  %v887 = vpop.f32.mrf.mxu0
  %v888 = vadd.f32 0.0, %v887
  %v889 = vpop.f32.mrf.mxu0
  %890 = vmatprep.mubr.f32.mxu0 0.0
  %891 = vmatmul.mubr.f32.gmra.mxu0 %v449
  %v892 = vpop.f32.mrf.mxu0
  %v893 = vadd.f32 0.0, %v892
  %v894 = vpop.f32.mrf.mxu0
  %895 = vmatprep.mubr.f32.mxu0 0.0
  %896 = vmatmul.mubr.f32.gmra.mxu0 %v452
  %v897 = vpop.f32.mrf.mxu0
  %v898 = vadd.f32 0.0, %v897
  %v899 = vpop.f32.mrf.mxu0
  %900 = vmatprep.mubr.f32.mxu0 0.0
  %901 = vmatmul.mubr.f32.gmra.mxu0 %v455
  %v902 = vpop.f32.mrf.mxu0
  %v903 = vadd.f32 0.0, %v902
  %v904 = vpop.f32.mrf.mxu0
  %905 = vmatprep.mubr.f32.mxu0 0.0
  %906 = vmatmul.mubr.f32.gmra.mxu0 %v458
  %v907 = vpop.f32.mrf.mxu0
  %v908 = vadd.f32 0.0, %v907
  %v909 = vpop.f32.mrf.mxu0
  %910 = vmatprep.mubr.f32.mxu0 0.0
  %911 = vmatmul.mubr.f32.gmra.mxu0 %v461
  %v912 = vpop.f32.mrf.mxu0
  %v913 = vadd.f32 0.0, %v912
  %v914 = vpop.f32.mrf.mxu0
  %915 = vmatprep.mubr.f32.mxu0 0.0
  %916 = vmatmul.mubr.f32.gmra.mxu0 %v464
  %v917 = vpop.f32.mrf.mxu0
  %v918 = vadd.f32 0.0, %v917
  %v919 = vpop.f32.mrf.mxu0
  %920 = vmatprep.mubr.f32.mxu0 0.0
  %921 = vmatmul.mubr.f32.gmra.mxu0 %v467
  %v922 = vpop.f32.mrf.mxu0
  %v923 = vadd.f32 0.0, %v922
  %v924 = vpop.f32.mrf.mxu0
  %925 = vmatprep.mubr.f32.mxu0 0.0
  %926 = vmatmul.mubr.f32.gmra.mxu0 %v470
  %v927 = vpop.f32.mrf.mxu0
  %v928 = vadd.f32 0.0, %v927
  %v929 = vpop.f32.mrf.mxu0
  %930 = vmatprep.mubr.f32.mxu0 0.0
  %931 = vmatmul.mubr.f32.gmra.mxu0 %v473
  %v932 = vpop.f32.mrf.mxu0
  %v933 = vadd.f32 0.0, %v932
  %v934 = vpop.f32.mrf.mxu0
  %935 = vmatprep.mubr.f32.mxu0 0.0
  %936 = vmatmul.mubr.f32.gmra.mxu0 %v476
  %v937 = vpop.f32.mrf.mxu0
  %v938 = vadd.f32 0.0, %v937
  %v939 = vpop.f32.mrf.mxu0
  %940 = vmatprep.mubr.f32.mxu0 0.0
  %941 = vmatmul.mubr.f32.gmra.mxu0 %v479
  %v942 = vpop.f32.mrf.mxu0
  %v943 = vadd.f32 0.0, %v942
  %v944 = vpop.f32.mrf.mxu0
  %945 = vdwg.mxu0
  %v946 = vmul.f32 %v548, %v548
  %v947 = vmul.f32 %v550, %v550
  %v948 = vmul.f32 %v554, %v554
  %v949 = vmul.f32 %v556, %v556
  %v950 = vmul.f32 %v560, %v560
  %v951 = vmul.f32 %v562, %v562
  %v952 = vmul.f32 %v566, %v566
  %v953 = vmul.f32 %v568, %v568
  %v954 = vmul.f32 %v572, %v572
  %v955 = vmul.f32 %v574, %v574
  %v956 = vmul.f32 %v578, %v578
  %v957 = vmul.f32 %v580, %v580
  %v958 = vmul.f32 %v584, %v584
  %v959 = vmul.f32 %v586, %v586
  %v960 = vmul.f32 %v590, %v590
  %v961 = vmul.f32 %v592, %v592
  %v962 = vmul.f32 %v596, %v596
  %v963 = vmul.f32 %v598, %v598
  %v964 = vmul.f32 %v602, %v602
  %v965 = vmul.f32 %v604, %v604
  %v966 = vmul.f32 %v608, %v608
  %v967 = vmul.f32 %v610, %v610
  %v968 = vmul.f32 %v614, %v614
  %v969 = vmul.f32 %v616, %v616
  %v970 = vmul.f32 %v620, %v620
  %v971 = vmul.f32 %v622, %v622
  %v972 = vmul.f32 %v626, %v626
  %v973 = vmul.f32 %v628, %v628
  %v974 = vmul.f32 %v632, %v632
  %v975 = vmul.f32 %v634, %v634
  %v976 = vmul.f32 %v638, %v638
  %v977 = vmul.f32 %v640, %v640
  %v978 = vmul.f32 %v644, %v644
  %v979 = vmul.f32 %v646, %v646
  %v980 = vmul.f32 %v650, %v650
  %v981 = vmul.f32 %v652, %v652
  %v982 = vmul.f32 %v656, %v656
  %v983 = vmul.f32 %v658, %v658
  %v984 = vmul.f32 %v662, %v662
  %v985 = vmul.f32 %v664, %v664
  %v986 = vmul.f32 %v668, %v668
  %v987 = vmul.f32 %v670, %v670
  %v988 = vmul.f32 %v674, %v674
  %v989 = vmul.f32 %v676, %v676
  %v990 = vmul.f32 %v680, %v680
  %v991 = vmul.f32 %v682, %v682
  %v992 = vmul.f32 %v686, %v686
  %v993 = vmul.f32 %v688, %v688
  %v994 = vmul.f32 %v692, %v692
  %v995 = vmul.f32 %v694, %v694
  %v996 = vmul.f32 %v698, %v698
  %v997 = vmul.f32 %v700, %v700
  %v998 = vmul.f32 %v704, %v704
  %v999 = vmul.f32 %v706, %v706
  %v1000 = vmul.f32 %v710, %v710
  %v1001 = vmul.f32 %v712, %v712
  %v1002 = vmul.f32 %v716, %v716
  %v1003 = vmul.f32 %v718, %v718
  %v1004 = vmul.f32 %v722, %v722
  %v1005 = vmul.f32 %v724, %v724
  %v1006 = vsel %vm269, %v947, 0.0
  %v1007 = vadd.f32 %v946, %v1006
  %1008 = vadd.xlane.f32.xlu0 %v1007
  %v1009 = vpop.xlane.xlu0 %1008
  %v1010 = vsel %vm269, %v949, 0.0
  %v1011 = vadd.f32 %v948, %v1010
  %1012 = vadd.xlane.f32.xlu0 %v1011
  %v1013 = vpop.xlane.xlu0 %1012
  %v1014 = vsel %vm269, %v951, 0.0
  %v1015 = vadd.f32 %v950, %v1014
  %1016 = vadd.xlane.f32.xlu0 %v1015
  %v1017 = vpop.xlane.xlu0 %1016
  %v1018 = vsel %vm269, %v953, 0.0
  %v1019 = vadd.f32 %v952, %v1018
  %1020 = vadd.xlane.f32.xlu0 %v1019
  %v1021 = vpop.xlane.xlu0 %1020
  %v1022 = vsel %vm269, %v955, 0.0
  %v1023 = vadd.f32 %v954, %v1022
  %1024 = vadd.xlane.f32.xlu0 %v1023
  %v1025 = vpop.xlane.xlu0 %1024
  %v1026 = vsel %vm269, %v957, 0.0
  %v1027 = vadd.f32 %v956, %v1026
  %1028 = vadd.xlane.f32.xlu0 %v1027
  %v1029 = vpop.xlane.xlu0 %1028
  %v1030 = vsel %vm269, %v959, 0.0
  %v1031 = vadd.f32 %v958, %v1030
  %1032 = vadd.xlane.f32.xlu0 %v1031
  %v1033 = vpop.xlane.xlu0 %1032
  %v1034 = vsel %vm269, %v961, 0.0
  %v1035 = vadd.f32 %v960, %v1034
  %1036 = vadd.xlane.f32.xlu0 %v1035
  %v1037 = vpop.xlane.xlu0 %1036
  %v1038 = vsel %vm269, %v963, 0.0
  %v1039 = vadd.f32 %v962, %v1038
  %1040 = vadd.xlane.f32.xlu0 %v1039
  %v1041 = vpop.xlane.xlu0 %1040
  %v1042 = vsel %vm269, %v965, 0.0
  %v1043 = vadd.f32 %v964, %v1042
  %1044 = vadd.xlane.f32.xlu0 %v1043
  %v1045 = vpop.xlane.xlu0 %1044
  %v1046 = vsel %vm269, %v967, 0.0
  %v1047 = vadd.f32 %v966, %v1046
  %1048 = vadd.xlane.f32.xlu0 %v1047
  %v1049 = vpop.xlane.xlu0 %1048
  %v1050 = vsel %vm269, %v969, 0.0
  %v1051 = vadd.f32 %v968, %v1050
  %1052 = vadd.xlane.f32.xlu0 %v1051
  %v1053 = vpop.xlane.xlu0 %1052
  %v1054 = vsel %vm269, %v971, 0.0
  %v1055 = vadd.f32 %v970, %v1054
  %1056 = vadd.xlane.f32.xlu0 %v1055
  %v1057 = vpop.xlane.xlu0 %1056
  %v1058 = vsel %vm269, %v973, 0.0
  %v1059 = vadd.f32 %v972, %v1058
  %1060 = vadd.xlane.f32.xlu0 %v1059
  %v1061 = vpop.xlane.xlu0 %1060
  %v1062 = vsel %vm269, %v975, 0.0
  %v1063 = vadd.f32 %v974, %v1062
  %1064 = vadd.xlane.f32.xlu0 %v1063
  %v1065 = vpop.xlane.xlu0 %1064
  %v1066 = vsel %vm269, %v977, 0.0
  %v1067 = vadd.f32 %v976, %v1066
  %1068 = vadd.xlane.f32.xlu0 %v1067
  %v1069 = vpop.xlane.xlu0 %1068
  %v1070 = vsel %vm269, %v979, 0.0
  %v1071 = vadd.f32 %v978, %v1070
  %1072 = vadd.xlane.f32.xlu0 %v1071
  %v1073 = vpop.xlane.xlu0 %1072
  %v1074 = vsel %vm269, %v981, 0.0
  %v1075 = vadd.f32 %v980, %v1074
  %1076 = vadd.xlane.f32.xlu0 %v1075
  %v1077 = vpop.xlane.xlu0 %1076
  %v1078 = vsel %vm269, %v983, 0.0
  %v1079 = vadd.f32 %v982, %v1078
  %1080 = vadd.xlane.f32.xlu0 %v1079
  %v1081 = vpop.xlane.xlu0 %1080
  %v1082 = vsel %vm269, %v985, 0.0
  %v1083 = vadd.f32 %v984, %v1082
  %1084 = vadd.xlane.f32.xlu0 %v1083
  %v1085 = vpop.xlane.xlu0 %1084
  %v1086 = vsel %vm269, %v987, 0.0
  %v1087 = vadd.f32 %v986, %v1086
  %1088 = vadd.xlane.f32.xlu0 %v1087
  %v1089 = vpop.xlane.xlu0 %1088
  %v1090 = vsel %vm269, %v989, 0.0
  %v1091 = vadd.f32 %v988, %v1090
  %1092 = vadd.xlane.f32.xlu0 %v1091
  %v1093 = vpop.xlane.xlu0 %1092
  %v1094 = vsel %vm269, %v991, 0.0
  %v1095 = vadd.f32 %v990, %v1094
  %1096 = vadd.xlane.f32.xlu0 %v1095
  %v1097 = vpop.xlane.xlu0 %1096
  %v1098 = vsel %vm269, %v993, 0.0
  %v1099 = vadd.f32 %v992, %v1098
  %1100 = vadd.xlane.f32.xlu0 %v1099
  %v1101 = vpop.xlane.xlu0 %1100
  %v1102 = vsel %vm269, %v995, 0.0
  %v1103 = vadd.f32 %v994, %v1102
  %1104 = vadd.xlane.f32.xlu0 %v1103
  %v1105 = vpop.xlane.xlu0 %1104
  %v1106 = vsel %vm269, %v997, 0.0
  %v1107 = vadd.f32 %v996, %v1106
  %1108 = vadd.xlane.f32.xlu0 %v1107
  %v1109 = vpop.xlane.xlu0 %1108
  %v1110 = vsel %vm269, %v999, 0.0
  %v1111 = vadd.f32 %v998, %v1110
  %1112 = vadd.xlane.f32.xlu0 %v1111
  %v1113 = vpop.xlane.xlu0 %1112
  %v1114 = vsel %vm269, %v1001, 0.0
  %v1115 = vadd.f32 %v1000, %v1114
  %1116 = vadd.xlane.f32.xlu0 %v1115
  %v1117 = vpop.xlane.xlu0 %1116
  %v1118 = vsel %vm269, %v1003, 0.0
  %v1119 = vadd.f32 %v1002, %v1118
  %1120 = vadd.xlane.f32.xlu0 %v1119
  %v1121 = vpop.xlane.xlu0 %1120
  %v1122 = vsel %vm269, %v1005, 0.0
  %v1123 = vadd.f32 %v1004, %v1122
  %1124 = vadd.xlane.f32.xlu0 %v1123
  %v1125 = vpop.xlane.xlu0 %1124
  %v1126 = vmul.f32 %v798, 0.0051020407
  %v1127 = vmul.f32 %v803, 0.0051020407
  %v1128 = vmul.f32 %v808, 0.0051020407
  %v1129 = vmul.f32 %v813, 0.0051020407
  %v1130 = vmul.f32 %v818, 0.0051020407
  %v1131 = vmul.f32 %v823, 0.0051020407
  %v1132 = vmul.f32 %v828, 0.0051020407
  %v1133 = vmul.f32 %v833, 0.0051020407
  %v1134 = vmul.f32 %v838, 0.0051020407
  %v1135 = vmul.f32 %v843, 0.0051020407
  %v1136 = vmul.f32 %v848, 0.0051020407
  %v1137 = vmul.f32 %v853, 0.0051020407
  %v1138 = vmul.f32 %v858, 0.0051020407
  %v1139 = vmul.f32 %v863, 0.0051020407
  %v1140 = vmul.f32 %v868, 0.0051020407
  %v1141 = vmul.f32 %v873, 0.0051020407
  %v1142 = vmul.f32 %v878, 0.0051020407
  %v1143 = vmul.f32 %v883, 0.0051020407
  %v1144 = vmul.f32 %v888, 0.0051020407
  %v1145 = vmul.f32 %v893, 0.0051020407
  %v1146 = vmul.f32 %v898, 0.0051020407
  %v1147 = vmul.f32 %v903, 0.0051020407
  %v1148 = vmul.f32 %v908, 0.0051020407
  %v1149 = vmul.f32 %v913, 0.0051020407
  %v1150 = vmul.f32 %v918, 0.0051020407
  %v1151 = vmul.f32 %v923, 0.0051020407
  %v1152 = vmul.f32 %v928, 0.0051020407
  %v1153 = vmul.f32 %v933, 0.0051020407
  %v1154 = vmul.f32 %v938, 0.0051020407
  %v1155 = vmul.f32 %v943, 0.0051020407
  %v1156 = vmul.f32 %v1009, 0.0051020407
  %v1157 = vmul.f32 %v1013, 0.0051020407
  %v1158 = vmul.f32 %v1017, 0.0051020407
  %v1159 = vmul.f32 %v1021, 0.0051020407
  %v1160 = vmul.f32 %v1025, 0.0051020407
  %v1161 = vmul.f32 %v1029, 0.0051020407
  %v1162 = vmul.f32 %v1033, 0.0051020407
  %v1163 = vmul.f32 %v1037, 0.0051020407
  %v1164 = vmul.f32 %v1041, 0.0051020407
  %v1165 = vmul.f32 %v1045, 0.0051020407
  %v1166 = vmul.f32 %v1049, 0.0051020407
  %v1167 = vmul.f32 %v1053, 0.0051020407
  %v1168 = vmul.f32 %v1057, 0.0051020407
  %v1169 = vmul.f32 %v1061, 0.0051020407
  %v1170 = vmul.f32 %v1065, 0.0051020407
  %v1171 = vmul.f32 %v1069, 0.0051020407
  %v1172 = vmul.f32 %v1073, 0.0051020407
  %v1173 = vmul.f32 %v1077, 0.0051020407
  %v1174 = vmul.f32 %v1081, 0.0051020407
  %v1175 = vmul.f32 %v1085, 0.0051020407
  %v1176 = vmul.f32 %v1089, 0.0051020407
  %v1177 = vmul.f32 %v1093, 0.0051020407
  %v1178 = vmul.f32 %v1097, 0.0051020407
  %v1179 = vmul.f32 %v1101, 0.0051020407
  %v1180 = vmul.f32 %v1105, 0.0051020407
  %v1181 = vmul.f32 %v1109, 0.0051020407
  %v1182 = vmul.f32 %v1113, 0.0051020407
  %v1183 = vmul.f32 %v1117, 0.0051020407
  %v1184 = vmul.f32 %v1121, 0.0051020407
  %v1185 = vmul.f32 %v1125, 0.0051020407
  %v1186 = vmul.f32 %v1126, %v1126
  %v1187 = vmul.f32 %v1127, %v1127
  %v1188 = vmul.f32 %v1128, %v1128
  %v1189 = vmul.f32 %v1129, %v1129
  %v1190 = vmul.f32 %v1130, %v1130
  %v1191 = vmul.f32 %v1131, %v1131
  %v1192 = vmul.f32 %v1132, %v1132
  %v1193 = vmul.f32 %v1133, %v1133
  %v1194 = vmul.f32 %v1134, %v1134
  %v1195 = vmul.f32 %v1135, %v1135
  %v1196 = vmul.f32 %v1136, %v1136
  %v1197 = vmul.f32 %v1137, %v1137
  %v1198 = vmul.f32 %v1138, %v1138
  %v1199 = vmul.f32 %v1139, %v1139
  %v1200 = vmul.f32 %v1140, %v1140
  %v1201 = vmul.f32 %v1141, %v1141
  %v1202 = vmul.f32 %v1142, %v1142
  %v1203 = vmul.f32 %v1143, %v1143
  %v1204 = vmul.f32 %v1144, %v1144
  %v1205 = vmul.f32 %v1145, %v1145
  %v1206 = vmul.f32 %v1146, %v1146
  %v1207 = vmul.f32 %v1147, %v1147
  %v1208 = vmul.f32 %v1148, %v1148
  %v1209 = vmul.f32 %v1149, %v1149
  %v1210 = vmul.f32 %v1150, %v1150
  %v1211 = vmul.f32 %v1151, %v1151
  %v1212 = vmul.f32 %v1152, %v1152
  %v1213 = vmul.f32 %v1153, %v1153
  %v1214 = vmul.f32 %v1154, %v1154
  %v1215 = vmul.f32 %v1155, %v1155
  %v1216 = vsub.f32 %v1156, %v1186
  %v1217 = vsub.f32 %v1157, %v1187
  %v1218 = vsub.f32 %v1158, %v1188
  %v1219 = vsub.f32 %v1159, %v1189
  %v1220 = vsub.f32 %v1160, %v1190
  %v1221 = vsub.f32 %v1161, %v1191
  %v1222 = vsub.f32 %v1162, %v1192
  %v1223 = vsub.f32 %v1163, %v1193
  %v1224 = vsub.f32 %v1164, %v1194
  %v1225 = vsub.f32 %v1165, %v1195
  %v1226 = vsub.f32 %v1166, %v1196
  %v1227 = vsub.f32 %v1167, %v1197
  %v1228 = vsub.f32 %v1168, %v1198
  %v1229 = vsub.f32 %v1169, %v1199
  %v1230 = vsub.f32 %v1170, %v1200
  %v1231 = vsub.f32 %v1171, %v1201
  %v1232 = vsub.f32 %v1172, %v1202
  %v1233 = vsub.f32 %v1173, %v1203
  %v1234 = vsub.f32 %v1174, %v1204
  %v1235 = vsub.f32 %v1175, %v1205
  %v1236 = vsub.f32 %v1176, %v1206
  %v1237 = vsub.f32 %v1177, %v1207
  %v1238 = vsub.f32 %v1178, %v1208
  %v1239 = vsub.f32 %v1179, %v1209
  %v1240 = vsub.f32 %v1180, %v1210
  %v1241 = vsub.f32 %v1181, %v1211
  %v1242 = vsub.f32 %v1182, %v1212
  %v1243 = vsub.f32 %v1183, %v1213
  %v1244 = vsub.f32 %v1184, %v1214
  %v1245 = vsub.f32 %v1185, %v1215
  %v1246 = vadd.f32 %v1216, 1e-05
  %v1247 = vadd.f32 %v1217, 1e-05
  %v1248 = vadd.f32 %v1218, 1e-05
  %v1249 = vadd.f32 %v1219, 1e-05
  %v1250 = vadd.f32 %v1220, 1e-05
  %v1251 = vadd.f32 %v1221, 1e-05
  %v1252 = vadd.f32 %v1222, 1e-05
  %v1253 = vadd.f32 %v1223, 1e-05
  %v1254 = vadd.f32 %v1224, 1e-05
  %v1255 = vadd.f32 %v1225, 1e-05
  %v1256 = vadd.f32 %v1226, 1e-05
  %v1257 = vadd.f32 %v1227, 1e-05
  %v1258 = vadd.f32 %v1228, 1e-05
  %v1259 = vadd.f32 %v1229, 1e-05
  %v1260 = vadd.f32 %v1230, 1e-05
  %v1261 = vadd.f32 %v1231, 1e-05
  %v1262 = vadd.f32 %v1232, 1e-05
  %v1263 = vadd.f32 %v1233, 1e-05
  %v1264 = vadd.f32 %v1234, 1e-05
  %v1265 = vadd.f32 %v1235, 1e-05
  %v1266 = vadd.f32 %v1236, 1e-05
  %v1267 = vadd.f32 %v1237, 1e-05
  %v1268 = vadd.f32 %v1238, 1e-05
  %v1269 = vadd.f32 %v1239, 1e-05
  %v1270 = vadd.f32 %v1240, 1e-05
  %v1271 = vadd.f32 %v1241, 1e-05
  %v1272 = vadd.f32 %v1242, 1e-05
  %v1273 = vadd.f32 %v1243, 1e-05
  %v1274 = vadd.f32 %v1244, 1e-05
  %v1275 = vadd.f32 %v1245, 1e-05
  %v1276 = vrsqrt.pop %v1246
  %v1277 = vrsqrt.pop %v1247
  %v1278 = vrsqrt.pop %v1248
  %v1279 = vrsqrt.pop %v1249
  %v1280 = vrsqrt.pop %v1250
  %v1281 = vrsqrt.pop %v1251
  %v1282 = vrsqrt.pop %v1252
  %v1283 = vrsqrt.pop %v1253
  %v1284 = vrsqrt.pop %v1254
  %v1285 = vrsqrt.pop %v1255
  %v1286 = vrsqrt.pop %v1256
  %v1287 = vrsqrt.pop %v1257
  %v1288 = vrsqrt.pop %v1258
  %v1289 = vrsqrt.pop %v1259
  %v1290 = vrsqrt.pop %v1260
  %v1291 = vrsqrt.pop %v1261
  %v1292 = vrsqrt.pop %v1262
  %v1293 = vrsqrt.pop %v1263
  %v1294 = vrsqrt.pop %v1264
  %v1295 = vrsqrt.pop %v1265
  %v1296 = vrsqrt.pop %v1266
  %v1297 = vrsqrt.pop %v1267
  %v1298 = vrsqrt.pop %v1268
  %v1299 = vrsqrt.pop %v1269
  %v1300 = vrsqrt.pop %v1270
  %v1301 = vrsqrt.pop %v1271
  %v1302 = vrsqrt.pop %v1272
  %v1303 = vrsqrt.pop %v1273
  %v1304 = vrsqrt.pop %v1274
  %v1305 = vrsqrt.pop %v1275
  %v1306 = vmul.f32 %v98, %v1276
  %v1307 = vmul.f32 %v99, %v1277
  %v1308 = vmul.f32 %v100, %v1278
  %v1309 = vmul.f32 %v101, %v1279
  %v1310 = vmul.f32 %v102, %v1280
  %v1311 = vmul.f32 %v103, %v1281
  %v1312 = vmul.f32 %v104, %v1282
  %v1313 = vmul.f32 %v105, %v1283
  %v1314 = vmul.f32 %v106, %v1284
  %v1315 = vmul.f32 %v107, %v1285
  %v1316 = vmul.f32 %v108, %v1286
  %v1317 = vmul.f32 %v109, %v1287
  %v1318 = vmul.f32 %v110, %v1288
  %v1319 = vmul.f32 %v111, %v1289
  %v1320 = vmul.f32 %v112, %v1290
  %v1321 = vmul.f32 %v113, %v1291
  %v1322 = vmul.f32 %v114, %v1292
  %v1323 = vmul.f32 %v115, %v1293
  %v1324 = vmul.f32 %v116, %v1294
  %v1325 = vmul.f32 %v117, %v1295
  %v1326 = vmul.f32 %v118, %v1296
  %v1327 = vmul.f32 %v119, %v1297
  %v1328 = vmul.f32 %v120, %v1298
  %v1329 = vmul.f32 %v121, %v1299
  %v1330 = vmul.f32 %v122, %v1300
  %v1331 = vmul.f32 %v123, %v1301
  %v1332 = vmul.f32 %v124, %v1302
  %v1333 = vmul.f32 %v125, %v1303
  %v1334 = vmul.f32 %v126, %v1304
  %v1335 = vmul.f32 %v127, %v1305
  %1337 = vset.pattern.permute.xlu0 0
  %1338 = vperm.xlu0 %1337, %v1306
  %v1339 = vpop.permute.xlu0 %1338
  %1342 = vset.pattern.permute.xlu0 0
  %1343 = vperm.xlu0 %1342, %v1307
  %v1344 = vpop.permute.xlu0 %1343
  %1347 = vset.pattern.permute.xlu0 0
  %1348 = vperm.xlu0 %1347, %v1308
  %v1349 = vpop.permute.xlu0 %1348
  %1352 = vset.pattern.permute.xlu0 0
  %1353 = vperm.xlu0 %1352, %v1309
  %v1354 = vpop.permute.xlu0 %1353
  %1357 = vset.pattern.permute.xlu0 0
  %1358 = vperm.xlu0 %1357, %v1310
  %v1359 = vpop.permute.xlu0 %1358
  %1362 = vset.pattern.permute.xlu0 0
  %1363 = vperm.xlu0 %1362, %v1311
  %v1364 = vpop.permute.xlu0 %1363
  %1367 = vset.pattern.permute.xlu0 0
  %1368 = vperm.xlu0 %1367, %v1312
  %v1369 = vpop.permute.xlu0 %1368
  %1372 = vset.pattern.permute.xlu0 0
  %1373 = vperm.xlu0 %1372, %v1313
  %v1374 = vpop.permute.xlu0 %1373
  %1377 = vset.pattern.permute.xlu0 0
  %1378 = vperm.xlu0 %1377, %v1314
  %v1379 = vpop.permute.xlu0 %1378
  %1382 = vset.pattern.permute.xlu0 0
  %1383 = vperm.xlu0 %1382, %v1315
  %v1384 = vpop.permute.xlu0 %1383
  %1387 = vset.pattern.permute.xlu0 0
  %1388 = vperm.xlu0 %1387, %v1316
  %v1389 = vpop.permute.xlu0 %1388
  %1392 = vset.pattern.permute.xlu0 0
  %1393 = vperm.xlu0 %1392, %v1317
  %v1394 = vpop.permute.xlu0 %1393
  %1397 = vset.pattern.permute.xlu0 0
  %1398 = vperm.xlu0 %1397, %v1318
  %v1399 = vpop.permute.xlu0 %1398
  %1402 = vset.pattern.permute.xlu0 0
  %1403 = vperm.xlu0 %1402, %v1319
  %v1404 = vpop.permute.xlu0 %1403
  %1407 = vset.pattern.permute.xlu0 0
  %1408 = vperm.xlu0 %1407, %v1320
  %v1409 = vpop.permute.xlu0 %1408
  %1412 = vset.pattern.permute.xlu0 0
  %1413 = vperm.xlu0 %1412, %v1321
  %v1414 = vpop.permute.xlu0 %1413
  %1417 = vset.pattern.permute.xlu0 0
  %1418 = vperm.xlu0 %1417, %v1322
  %v1419 = vpop.permute.xlu0 %1418
  %1422 = vset.pattern.permute.xlu0 0
  %1423 = vperm.xlu0 %1422, %v1323
  %v1424 = vpop.permute.xlu0 %1423
  %1427 = vset.pattern.permute.xlu0 0
  %1428 = vperm.xlu0 %1427, %v1324
  %v1429 = vpop.permute.xlu0 %1428
  %1432 = vset.pattern.permute.xlu0 0
  %1433 = vperm.xlu0 %1432, %v1325
  %v1434 = vpop.permute.xlu0 %1433
  %1437 = vset.pattern.permute.xlu0 0
  %1438 = vperm.xlu0 %1437, %v1326
  %v1439 = vpop.permute.xlu0 %1438
  %1442 = vset.pattern.permute.xlu0 0
  %1443 = vperm.xlu0 %1442, %v1327
  %v1444 = vpop.permute.xlu0 %1443
  %1447 = vset.pattern.permute.xlu0 0
  %1448 = vperm.xlu0 %1447, %v1328
  %v1449 = vpop.permute.xlu0 %1448
  %1452 = vset.pattern.permute.xlu0 0
  %1453 = vperm.xlu0 %1452, %v1329
  %v1454 = vpop.permute.xlu0 %1453
  %1457 = vset.pattern.permute.xlu0 0
  %1458 = vperm.xlu0 %1457, %v1330
  %v1459 = vpop.permute.xlu0 %1458
  %1462 = vset.pattern.permute.xlu0 0
  %1463 = vperm.xlu0 %1462, %v1331
  %v1464 = vpop.permute.xlu0 %1463
  %1467 = vset.pattern.permute.xlu0 0
  %1468 = vperm.xlu0 %1467, %v1332
  %v1469 = vpop.permute.xlu0 %1468
  %1472 = vset.pattern.permute.xlu0 0
  %1473 = vperm.xlu0 %1472, %v1333
  %v1474 = vpop.permute.xlu0 %1473
  %1477 = vset.pattern.permute.xlu0 0
  %1478 = vperm.xlu0 %1477, %v1334
  %v1479 = vpop.permute.xlu0 %1478
  %1482 = vset.pattern.permute.xlu0 0
  %1483 = vperm.xlu0 %1482, %v1335
  %v1484 = vpop.permute.xlu0 %1483
  %v1486 = vmul.f32 %v548, %v1339
  %v1487 = vmul.f32 %v550, %v1339
  %v1488 = vmul.f32 %v554, %v1344
  %v1489 = vmul.f32 %v556, %v1344
  %v1490 = vmul.f32 %v560, %v1349
  %v1491 = vmul.f32 %v562, %v1349
  %v1492 = vmul.f32 %v566, %v1354
  %v1493 = vmul.f32 %v568, %v1354
  %v1494 = vmul.f32 %v572, %v1359
  %v1495 = vmul.f32 %v574, %v1359
  %v1496 = vmul.f32 %v578, %v1364
  %v1497 = vmul.f32 %v580, %v1364
  %v1498 = vmul.f32 %v584, %v1369
  %v1499 = vmul.f32 %v586, %v1369
  %v1500 = vmul.f32 %v590, %v1374
  %v1501 = vmul.f32 %v592, %v1374
  %v1502 = vmul.f32 %v596, %v1379
  %v1503 = vmul.f32 %v598, %v1379
  %v1504 = vmul.f32 %v602, %v1384
  %v1505 = vmul.f32 %v604, %v1384
  %v1506 = vmul.f32 %v608, %v1389
  %v1507 = vmul.f32 %v610, %v1389
  %v1508 = vmul.f32 %v614, %v1394
  %v1509 = vmul.f32 %v616, %v1394
  %v1510 = vmul.f32 %v620, %v1399
  %v1511 = vmul.f32 %v622, %v1399
  %v1512 = vmul.f32 %v626, %v1404
  %v1513 = vmul.f32 %v628, %v1404
  %v1514 = vmul.f32 %v632, %v1409
  %v1515 = vmul.f32 %v634, %v1409
  %v1516 = vmul.f32 %v638, %v1414
  %v1517 = vmul.f32 %v640, %v1414
  %v1518 = vmul.f32 %v644, %v1419
  %v1519 = vmul.f32 %v646, %v1419
  %v1520 = vmul.f32 %v650, %v1424
  %v1521 = vmul.f32 %v652, %v1424
  %v1522 = vmul.f32 %v656, %v1429
  %v1523 = vmul.f32 %v658, %v1429
  %v1524 = vmul.f32 %v662, %v1434
  %v1525 = vmul.f32 %v664, %v1434
  %v1526 = vmul.f32 %v668, %v1439
  %v1527 = vmul.f32 %v670, %v1439
  %v1528 = vmul.f32 %v674, %v1444
  %v1529 = vmul.f32 %v676, %v1444
  %v1530 = vmul.f32 %v680, %v1449
  %v1531 = vmul.f32 %v682, %v1449
  %v1532 = vmul.f32 %v686, %v1454
  %v1533 = vmul.f32 %v688, %v1454
  %v1534 = vmul.f32 %v692, %v1459
  %v1535 = vmul.f32 %v694, %v1459
  %v1536 = vmul.f32 %v698, %v1464
  %v1537 = vmul.f32 %v700, %v1464
  %v1538 = vmul.f32 %v704, %v1469
  %v1539 = vmul.f32 %v706, %v1469
  %v1540 = vmul.f32 %v710, %v1474
  %v1541 = vmul.f32 %v712, %v1474
  %v1542 = vmul.f32 %v716, %v1479
  %v1543 = vmul.f32 %v718, %v1479
  %v1544 = vmul.f32 %v722, %v1484
  %v1545 = vmul.f32 %v724, %v1484
  %v1546 = vmul.f32 %v1126, %v1306
  %v1547 = vmul.f32 %v1127, %v1307
  %v1548 = vmul.f32 %v1128, %v1308
  %v1549 = vmul.f32 %v1129, %v1309
  %v1550 = vmul.f32 %v1130, %v1310
  %v1551 = vmul.f32 %v1131, %v1311
  %v1552 = vmul.f32 %v1132, %v1312
  %v1553 = vmul.f32 %v1133, %v1313
  %v1554 = vmul.f32 %v1134, %v1314
  %v1555 = vmul.f32 %v1135, %v1315
  %v1556 = vmul.f32 %v1136, %v1316
  %v1557 = vmul.f32 %v1137, %v1317
  %v1558 = vmul.f32 %v1138, %v1318
  %v1559 = vmul.f32 %v1139, %v1319
  %v1560 = vmul.f32 %v1140, %v1320
  %v1561 = vmul.f32 %v1141, %v1321
  %v1562 = vmul.f32 %v1142, %v1322
  %v1563 = vmul.f32 %v1143, %v1323
  %v1564 = vmul.f32 %v1144, %v1324
  %v1565 = vmul.f32 %v1145, %v1325
  %v1566 = vmul.f32 %v1146, %v1326
  %v1567 = vmul.f32 %v1147, %v1327
  %v1568 = vmul.f32 %v1148, %v1328
  %v1569 = vmul.f32 %v1149, %v1329
  %v1570 = vmul.f32 %v1150, %v1330
  %v1571 = vmul.f32 %v1151, %v1331
  %v1572 = vmul.f32 %v1152, %v1332
  %v1573 = vmul.f32 %v1153, %v1333
  %v1574 = vmul.f32 %v1154, %v1334
  %v1575 = vmul.f32 %v1155, %v1335
  %v1576 = vsub.f32 %v128, %v1546
  %v1577 = vsub.f32 %v129, %v1547
  %v1578 = vsub.f32 %v130, %v1548
  %v1579 = vsub.f32 %v131, %v1549
  %v1580 = vsub.f32 %v132, %v1550
  %v1581 = vsub.f32 %v133, %v1551
  %v1582 = vsub.f32 %v134, %v1552
  %v1583 = vsub.f32 %v135, %v1553
  %v1584 = vsub.f32 %v136, %v1554
  %v1585 = vsub.f32 %v137, %v1555
  %v1586 = vsub.f32 %v138, %v1556
  %v1587 = vsub.f32 %v139, %v1557
  %v1588 = vsub.f32 %v140, %v1558
  %v1589 = vsub.f32 %v141, %v1559
  %v1590 = vsub.f32 %v142, %v1560
  %v1591 = vsub.f32 %v143, %v1561
  %v1592 = vsub.f32 %v144, %v1562
  %v1593 = vsub.f32 %v145, %v1563
  %v1594 = vsub.f32 %v146, %v1564
  %v1595 = vsub.f32 %v147, %v1565
  %v1596 = vsub.f32 %v148, %v1566
  %v1597 = vsub.f32 %v149, %v1567
  %v1598 = vsub.f32 %v150, %v1568
  %v1599 = vsub.f32 %v151, %v1569
  %v1600 = vsub.f32 %v152, %v1570
  %v1601 = vsub.f32 %v153, %v1571
  %v1602 = vsub.f32 %v154, %v1572
  %v1603 = vsub.f32 %v155, %v1573
  %v1604 = vsub.f32 %v156, %v1574
  %v1605 = vsub.f32 %v157, %v1575
  %1607 = vset.pattern.permute.xlu0 0
  %1608 = vperm.xlu0 %1607, %v1576
  %v1609 = vpop.permute.xlu0 %1608
  %1612 = vset.pattern.permute.xlu0 0
  %1613 = vperm.xlu0 %1612, %v1577
  %v1614 = vpop.permute.xlu0 %1613
  %1617 = vset.pattern.permute.xlu0 0
  %1618 = vperm.xlu0 %1617, %v1578
  %v1619 = vpop.permute.xlu0 %1618
  %1622 = vset.pattern.permute.xlu0 0
  %1623 = vperm.xlu0 %1622, %v1579
  %v1624 = vpop.permute.xlu0 %1623
  %1627 = vset.pattern.permute.xlu0 0
  %1628 = vperm.xlu0 %1627, %v1580
  %v1629 = vpop.permute.xlu0 %1628
  %1632 = vset.pattern.permute.xlu0 0
  %1633 = vperm.xlu0 %1632, %v1581
  %v1634 = vpop.permute.xlu0 %1633
  %1637 = vset.pattern.permute.xlu0 0
  %1638 = vperm.xlu0 %1637, %v1582
  %v1639 = vpop.permute.xlu0 %1638
  %1642 = vset.pattern.permute.xlu0 0
  %1643 = vperm.xlu0 %1642, %v1583
  %v1644 = vpop.permute.xlu0 %1643
  %1647 = vset.pattern.permute.xlu0 0
  %1648 = vperm.xlu0 %1647, %v1584
  %v1649 = vpop.permute.xlu0 %1648
  %1652 = vset.pattern.permute.xlu0 0
  %1653 = vperm.xlu0 %1652, %v1585
  %v1654 = vpop.permute.xlu0 %1653
  %1657 = vset.pattern.permute.xlu0 0
  %1658 = vperm.xlu0 %1657, %v1586
  %v1659 = vpop.permute.xlu0 %1658
  %1662 = vset.pattern.permute.xlu0 0
  %1663 = vperm.xlu0 %1662, %v1587
  %v1664 = vpop.permute.xlu0 %1663
  %1667 = vset.pattern.permute.xlu0 0
  %1668 = vperm.xlu0 %1667, %v1588
  %v1669 = vpop.permute.xlu0 %1668
  %1672 = vset.pattern.permute.xlu0 0
  %1673 = vperm.xlu0 %1672, %v1589
  %v1674 = vpop.permute.xlu0 %1673
  %1677 = vset.pattern.permute.xlu0 0
  %1678 = vperm.xlu0 %1677, %v1590
  %v1679 = vpop.permute.xlu0 %1678
  %1682 = vset.pattern.permute.xlu0 0
  %1683 = vperm.xlu0 %1682, %v1591
  %v1684 = vpop.permute.xlu0 %1683
  %1687 = vset.pattern.permute.xlu0 0
  %1688 = vperm.xlu0 %1687, %v1592
  %v1689 = vpop.permute.xlu0 %1688
  %1692 = vset.pattern.permute.xlu0 0
  %1693 = vperm.xlu0 %1692, %v1593
  %v1694 = vpop.permute.xlu0 %1693
  %1697 = vset.pattern.permute.xlu0 0
  %1698 = vperm.xlu0 %1697, %v1594
  %v1699 = vpop.permute.xlu0 %1698
  %1702 = vset.pattern.permute.xlu0 0
  %1703 = vperm.xlu0 %1702, %v1595
  %v1704 = vpop.permute.xlu0 %1703
  %1707 = vset.pattern.permute.xlu0 0
  %1708 = vperm.xlu0 %1707, %v1596
  %v1709 = vpop.permute.xlu0 %1708
  %1712 = vset.pattern.permute.xlu0 0
  %1713 = vperm.xlu0 %1712, %v1597
  %v1714 = vpop.permute.xlu0 %1713
  %1717 = vset.pattern.permute.xlu0 0
  %1718 = vperm.xlu0 %1717, %v1598
  %v1719 = vpop.permute.xlu0 %1718
  %1722 = vset.pattern.permute.xlu0 0
  %1723 = vperm.xlu0 %1722, %v1599
  %v1724 = vpop.permute.xlu0 %1723
  %1727 = vset.pattern.permute.xlu0 0
  %1728 = vperm.xlu0 %1727, %v1600
  %v1729 = vpop.permute.xlu0 %1728
  %1732 = vset.pattern.permute.xlu0 0
  %1733 = vperm.xlu0 %1732, %v1601
  %v1734 = vpop.permute.xlu0 %1733
  %1737 = vset.pattern.permute.xlu0 0
  %1738 = vperm.xlu0 %1737, %v1602
  %v1739 = vpop.permute.xlu0 %1738
  %1742 = vset.pattern.permute.xlu0 0
  %1743 = vperm.xlu0 %1742, %v1603
  %v1744 = vpop.permute.xlu0 %1743
  %1747 = vset.pattern.permute.xlu0 0
  %1748 = vperm.xlu0 %1747, %v1604
  %v1749 = vpop.permute.xlu0 %1748
  %1752 = vset.pattern.permute.xlu0 0
  %1753 = vperm.xlu0 %1752, %v1605
  %v1754 = vpop.permute.xlu0 %1753
  %v1756 = vadd.f32 %v1486, %v1609
  %v1757 = vadd.f32 %v1487, %v1609
  %v1758 = vadd.f32 %v1488, %v1614
  %v1759 = vadd.f32 %v1489, %v1614
  %v1760 = vadd.f32 %v1490, %v1619
  %v1761 = vadd.f32 %v1491, %v1619
  %v1762 = vadd.f32 %v1492, %v1624
  %v1763 = vadd.f32 %v1493, %v1624
  %v1764 = vadd.f32 %v1494, %v1629
  %v1765 = vadd.f32 %v1495, %v1629
  %v1766 = vadd.f32 %v1496, %v1634
  %v1767 = vadd.f32 %v1497, %v1634
  %v1768 = vadd.f32 %v1498, %v1639
  %v1769 = vadd.f32 %v1499, %v1639
  %v1770 = vadd.f32 %v1500, %v1644
  %v1771 = vadd.f32 %v1501, %v1644
  %v1772 = vadd.f32 %v1502, %v1649
  %v1773 = vadd.f32 %v1503, %v1649
  %v1774 = vadd.f32 %v1504, %v1654
  %v1775 = vadd.f32 %v1505, %v1654
  %v1776 = vadd.f32 %v1506, %v1659
  %v1777 = vadd.f32 %v1507, %v1659
  %v1778 = vadd.f32 %v1508, %v1664
  %v1779 = vadd.f32 %v1509, %v1664
  %v1780 = vadd.f32 %v1510, %v1669
  %v1781 = vadd.f32 %v1511, %v1669
  %v1782 = vadd.f32 %v1512, %v1674
  %v1783 = vadd.f32 %v1513, %v1674
  %v1784 = vadd.f32 %v1514, %v1679
  %v1785 = vadd.f32 %v1515, %v1679
  %v1786 = vadd.f32 %v1516, %v1684
  %v1787 = vadd.f32 %v1517, %v1684
  %v1788 = vadd.f32 %v1518, %v1689
  %v1789 = vadd.f32 %v1519, %v1689
  %v1790 = vadd.f32 %v1520, %v1694
  %v1791 = vadd.f32 %v1521, %v1694
  %v1792 = vadd.f32 %v1522, %v1699
  %v1793 = vadd.f32 %v1523, %v1699
  %v1794 = vadd.f32 %v1524, %v1704
  %v1795 = vadd.f32 %v1525, %v1704
  %v1796 = vadd.f32 %v1526, %v1709
  %v1797 = vadd.f32 %v1527, %v1709
  %v1798 = vadd.f32 %v1528, %v1714
  %v1799 = vadd.f32 %v1529, %v1714
  %v1800 = vadd.f32 %v1530, %v1719
  %v1801 = vadd.f32 %v1531, %v1719
  %v1802 = vadd.f32 %v1532, %v1724
  %v1803 = vadd.f32 %v1533, %v1724
  %v1804 = vadd.f32 %v1534, %v1729
  %v1805 = vadd.f32 %v1535, %v1729
  %v1806 = vadd.f32 %v1536, %v1734
  %v1807 = vadd.f32 %v1537, %v1734
  %v1808 = vadd.f32 %v1538, %v1739
  %v1809 = vadd.f32 %v1539, %v1739
  %v1810 = vadd.f32 %v1540, %v1744
  %v1811 = vadd.f32 %v1541, %v1744
  %v1812 = vadd.f32 %v1542, %v1749
  %v1813 = vadd.f32 %v1543, %v1749
  %v1814 = vadd.f32 %v1544, %v1754
  %v1815 = vadd.f32 %v1545, %v1754
  %1816 = vst [vmem:[%s4] sm:$0xff] %v1756
  %1817 = vst.msk [vmem:[%s4 + $0x8] sm:$0xff] %vm269, %v1757
  %1818 = vst [vmem:[%s4 + $0x10] sm:$0xff] %v1758
  %1819 = vst.msk [vmem:[%s4 + $0x18] sm:$0xff] %vm269, %v1759
  %1820 = vst [vmem:[%s4 + $0x20] sm:$0xff] %v1760
  %1821 = vst.msk [vmem:[%s4 + $0x28] sm:$0xff] %vm269, %v1761
  %1822 = vst [vmem:[%s4 + $0x30] sm:$0xff] %v1762
  %1823 = vst.msk [vmem:[%s4 + $0x38] sm:$0xff] %vm269, %v1763
  %1824 = vst [vmem:[%s4 + $0x40] sm:$0xff] %v1764
  %1825 = vst.msk [vmem:[%s4 + $0x48] sm:$0xff] %vm269, %v1765
  %1826 = vst [vmem:[%s4 + $0x50] sm:$0xff] %v1766
  %1827 = vst.msk [vmem:[%s4 + $0x58] sm:$0xff] %vm269, %v1767
  %1828 = vst [vmem:[%s4 + $0x60] sm:$0xff] %v1768
  %1829 = vst.msk [vmem:[%s4 + $0x68] sm:$0xff] %vm269, %v1769
  %1830 = vst [vmem:[%s4 + $0x70] sm:$0xff] %v1770
  %1831 = vst.msk [vmem:[%s4 + $0x78] sm:$0xff] %vm269, %v1771
  %1832 = vst [vmem:[%s4 + $0x80] sm:$0xff] %v1772
  %1833 = vst.msk [vmem:[%s4 + $0x88] sm:$0xff] %vm269, %v1773
  %1834 = vst [vmem:[%s4 + $0x90] sm:$0xff] %v1774
  %1835 = vst.msk [vmem:[%s4 + $0x98] sm:$0xff] %vm269, %v1775
  %1836 = vst [vmem:[%s4 + $0xa0] sm:$0xff] %v1776
  %1837 = vst.msk [vmem:[%s4 + $0xa8] sm:$0xff] %vm269, %v1777
  %1838 = vst [vmem:[%s4 + $0xb0] sm:$0xff] %v1778
  %1839 = vst.msk [vmem:[%s4 + $0xb8] sm:$0xff] %vm269, %v1779
  %1840 = vst [vmem:[%s4 + $0xc0] sm:$0xff] %v1780
  %1841 = vst.msk [vmem:[%s4 + $0xc8] sm:$0xff] %vm269, %v1781
  %1842 = vst [vmem:[%s4 + $0xd0] sm:$0xff] %v1782
  %1843 = vst.msk [vmem:[%s4 + $0xd8] sm:$0xff] %vm269, %v1783
  %1844 = vst [vmem:[%s4 + $0xe0] sm:$0xff] %v1784
  %1845 = vst.msk [vmem:[%s4 + $0xe8] sm:$0xff] %vm269, %v1785
  %1846 = vst [vmem:[%s4 + $0xf0] sm:$0xff] %v1786
  %1847 = vst.msk [vmem:[%s4 + $0xf8] sm:$0xff] %vm269, %v1787
  %1848 = vst [vmem:[%s4 + $0x100] sm:$0xff] %v1788
  %1849 = vst.msk [vmem:[%s4 + $0x108] sm:$0xff] %vm269, %v1789
  %1850 = vst [vmem:[%s4 + $0x110] sm:$0xff] %v1790
  %1851 = vst.msk [vmem:[%s4 + $0x118] sm:$0xff] %vm269, %v1791
  %1852 = vst [vmem:[%s4 + $0x120] sm:$0xff] %v1792
  %1853 = vst.msk [vmem:[%s4 + $0x128] sm:$0xff] %vm269, %v1793
  %1854 = vst [vmem:[%s4 + $0x130] sm:$0xff] %v1794
  %1855 = vst.msk [vmem:[%s4 + $0x138] sm:$0xff] %vm269, %v1795
  %1856 = vst [vmem:[%s4 + $0x140] sm:$0xff] %v1796
  %1857 = vst.msk [vmem:[%s4 + $0x148] sm:$0xff] %vm269, %v1797
  %1858 = vst [vmem:[%s4 + $0x150] sm:$0xff] %v1798
  %1859 = vst.msk [vmem:[%s4 + $0x158] sm:$0xff] %vm269, %v1799
  %1860 = vst [vmem:[%s4 + $0x160] sm:$0xff] %v1800
  %1861 = vst.msk [vmem:[%s4 + $0x168] sm:$0xff] %vm269, %v1801
  %1862 = vst [vmem:[%s4 + $0x170] sm:$0xff] %v1802
  %1863 = vst.msk [vmem:[%s4 + $0x178] sm:$0xff] %vm269, %v1803
  %1864 = vst [vmem:[%s4 + $0x180] sm:$0xff] %v1804
  %1865 = vst.msk [vmem:[%s4 + $0x188] sm:$0xff] %vm269, %v1805
  %1866 = vst [vmem:[%s4 + $0x190] sm:$0xff] %v1806
  %1867 = vst.msk [vmem:[%s4 + $0x198] sm:$0xff] %vm269, %v1807
  %1868 = vst [vmem:[%s4 + $0x1a0] sm:$0xff] %v1808
  %1869 = vst.msk [vmem:[%s4 + $0x1a8] sm:$0xff] %vm269, %v1809
  %1870 = vst [vmem:[%s4 + $0x1b0] sm:$0xff] %v1810
  %1871 = vst.msk [vmem:[%s4 + $0x1b8] sm:$0xff] %vm269, %v1811
  %1872 = vst [vmem:[%s4 + $0x1c0] sm:$0xff] %v1812
  %1873 = vst.msk [vmem:[%s4 + $0x1c8] sm:$0xff] %vm269, %v1813
  %1874 = vst [vmem:[%s4 + $0x1d0] sm:$0xff] %v1814
  %1875 = vst.msk [vmem:[%s4 + $0x1d8] sm:$0xff] %vm269, %v1815
  // Predicated region
  $region18: #{fused_conv_bn_conv_bn.1} parent=0 // pred_check
    _
  $region19: #{fused_conv_bn_conv_bn.1} parent=0 // pred_check_branch
    %1877 = sbr.rel (0) target = $region21
  $region20: #{fused_conv_bn_conv_bn.1} parent=0 // pred_region
    _
  $region21: #{fused_conv_bn_conv_bn.1} parent=0 // pred_fallthru
    _
  // Predicated region
  $region22: #{fused_conv_bn_conv_bn.1} parent=0 // pred_check
    _
  $region23: #{fused_conv_bn_conv_bn.1} parent=0 // pred_check_branch
    %1879 = sbr.rel (0) target = $region25
  $region24: #{fused_conv_bn_conv_bn.1} parent=0 // pred_region
    _
  $region25: #{fused_conv_bn_conv_bn.1} parent=0 // pred_fallthru
    _

</llo_original>
